<compile_context>
chip_gen: v7x
topology: tpu7x:2x2x1
jax: 0.10.0
libtpu: 0.0.40
codegen_flags: <defaults>
</compile_context>

<pallas_src>
import functools

import jax
import jax.numpy as jnp
from jax import lax
from jax.experimental import pallas as pl
from jax.experimental.pallas import tpu as pltpu

_HIGHEST = jax.lax.Precision.HIGHEST   # reference only
_NEG_BIG = -1e30                       # bias for padded vocab columns


# ----------------------------- bf16_3x helpers (Precision.HIGH emulation) ------------------
def _split_bf16(a):
    hi = a.astype(jnp.bfloat16)
    lo = (a - hi.astype(jnp.float32)).astype(jnp.bfloat16)
    return hi, lo


def _dot3(a_hi, a_lo, b_hi, b_lo):
    d = lambda u, v: jnp.dot(u, v, preferred_element_type=jnp.float32)
    return d(a_hi, b_hi) + d(a_hi, b_lo) + d(a_lo, b_hi)


# ----------------------------------- Fused kernel ------------------------------------------
def slu_fused_kernel(x_ref, wih_ref, whh_ref, bg_ref, wout_ref, bout_ref, out_ref,
                     *, T, Bp, H):
    """Shapes (Bp = padded batch, Vp = padded vocab):
      x_ref    : (T*Bp, E)
      wih_ref  : (E, 8H)   columns = [fwd i,f,o,g | bwd i,f,o,g]
      whh_ref  : (2H, 4H)  rows    = [Whh_f^T ; Whh_b^T], columns = [i,f,o,g]
      bg_ref   : (1, 8H)   fused b_ih + b_hh, both directions, reordered
      wout_ref : (2H, Vp)
      bout_ref : (1, Vp)   padded vocab entries = -1e30
      out_ref  : (T*Bp, Vp)
    """
    G = 4 * H

    # ---- Stage 1: input projection for BOTH directions, biases fused (one matmul) ----
    x_hi, x_lo = _split_bf16(x_ref[...])
    wih_hi, wih_lo = _split_bf16(wih_ref[...])
    gates_in = _dot3(x_hi, x_lo, wih_hi, wih_lo) + bg_ref[...]        # (T*Bp, 8H)

    # Recurrent weight split hoisted out of the loop.
    whh_hi, whh_lo = _split_bf16(whh_ref[...])                        # (2H, 4H)

    # Direction mask: rows [0:Bp] keep cols [0:H] (forward), rows [Bp:2Bp] keep cols [H:2H].
    row = lax.broadcasted_iota(jnp.int32, (2 * Bp, 2 * H), 0)
    col = lax.broadcasted_iota(jnp.int32, (2 * Bp, 2 * H), 1)
    dir_mask = ((row < Bp) == (col < H)).astype(jnp.float32)          # (2Bp, 2H)

    c = jnp.zeros((2 * Bp, H), jnp.float32)                           # [cf ; cb]
    h_stack = None                                                    # set at end of step 0
    hf_rows = [None] * T
    hb_rows = [None] * T

    # ---- Stage 2: recurrence, fully unrolled (T static). One dense (2Bp,2H)x(2H,4H) MXU
    #      matmul, one wide sigmoid and two tanhs per step, covering BOTH directions. ----
    for t in range(T):
        tb = T - 1 - t
        g_in = jnp.concatenate(
            [gates_in[t * Bp:(t + 1) * Bp, 0:G],            # forward gates at time t
             gates_in[tb * Bp:(tb + 1) * Bp, G:2 * G]],     # backward gates at time tb
            axis=0)                                         # (2Bp, 4H)
        if t == 0:
            g = g_in                                        # h0 = 0 -> no recurrent term
        else:
            hs_hi, hs_lo = _split_bf16(h_stack)
            g = g_in + _dot3(hs_hi, hs_lo, whh_hi, whh_lo)  # (2Bp, 4H)

        s = jax.nn.sigmoid(g[:, 0:3 * H])                   # i | f | o, both directions
        gg = jnp.tanh(g[:, 3 * H:4 * H])                    # g gate, both directions
        i_g = s[:, 0:H]
        f_g = s[:, H:2 * H]
        o_g = s[:, 2 * H:3 * H]
        c = f_g * c + i_g * gg                              # (2Bp, H)
        h_new = o_g * jnp.tanh(c)                           # (2Bp, H)

        hf_rows[t] = h_new[0:Bp]                            # forward hidden at time t
        hb_rows[tb] = h_new[Bp:2 * Bp]                      # backward hidden at time tb

        # Next-step LHS: [[hf | 0], [0 | hb]]  (hidden never leaves vregs).
        h_stack = jnp.concatenate([h_new, h_new], axis=1) * dir_mask

    # ---- Stage 3: assemble hidden matrix in vregs, Linear head + log_softmax ----
    hidden = jnp.concatenate(
        [jnp.concatenate([hf_rows[t], hb_rows[t]], axis=1) for t in range(T)],
        axis=0)                                             # (T*Bp, 2H)

    h_hi, h_lo = _split_bf16(hidden)
    wo_hi, wo_lo = _split_bf16(wout_ref[...])
    logits = _dot3(h_hi, h_lo, wo_hi, wo_lo) + bout_ref[...]          # (T*Bp, Vp)

    m = jnp.max(logits, axis=-1, keepdims=True)
    z = logits - m
    lse = jnp.log(jnp.sum(jnp.exp(z), axis=-1, keepdims=True))
    out_ref[...] = z - lse


# ----------------------------------- Wrapper -----------------------------------------------
def _reorder_gates(w, H):
    # PyTorch row blocks [i; f; g; o] -> [i; f; o; g] (sigmoid gates contiguous).
    return jnp.concatenate([w[0:2 * H], w[3 * H:4 * H], w[2 * H:3 * H]], axis=0)


@jax.jit
def slu_decoder_rnn(inputs, params):
    """inputs: (T, B, E) float32.  Returns (T*B, voc_size) log-probabilities."""
    T, B, E = inputs.shape
    H = params["whh_f"].shape[1]          # whh_* has shape (4H, H)
    V = params["w_lin"].shape[0]

    Bp = ((B + 7) // 8) * 8               # pad batch to a full sublane
    Vp = ((V + 127) // 128) * 128         # pad vocab to a full lane tile

    # Input-projection weight (gate columns reordered), both directions: (E, 8H).
    wih_cat = jnp.concatenate([_reorder_gates(params["wih_f"], H).T,
                               _reorder_gates(params["wih_b"], H).T], axis=1)
    # Fused gate biases (b_ih + b_hh), both directions, reordered: (1, 8H).
    bg = jnp.concatenate([_reorder_gates(params["bih_f"] + params["bhh_f"], H),
                          _reorder_gates(params["bih_b"] + params["bhh_b"], H)]
                         ).reshape(1, 8 * H)
    # Dense row-stacked recurrent weight: (2H, 4H) = [Whh_f^T ; Whh_b^T] (reordered).
    whh_dense = jnp.concatenate([_reorder_gates(params["whh_f"], H).T,
                                 _reorder_gates(params["whh_b"], H).T], axis=0)

    # Head, padded to a lane-dense Vp; padded bias = -1e30 so the extra columns never
    # influence the row max / logsumexp.
    w_out = jnp.pad(params["w_lin"].T, ((0, 0), (0, Vp - V)))                  # (2H, Vp)
    b_out = jnp.pad(params["b_lin"], (0, Vp - V),
                    constant_values=_NEG_BIG).reshape(1, Vp)                   # (1, Vp)

    x_flat = jnp.pad(inputs, ((0, 0), (0, Bp - B), (0, 0))).reshape(T * Bp, E)

    flops = (2 * T * Bp * E * 8 * H               # input projection
             + 2 * T * (2 * Bp) * (2 * H) * (4 * H)   # recurrent matmuls
             + 2 * T * Bp * (2 * H) * Vp)         # head
    transcendentals = T * (2 * Bp) * (5 * H) + T * Bp * (Vp + 1)
    bytes_accessed = 4 * (T * Bp * E + E * 8 * H + 2 * H * 4 * H + 8 * H
                          + 2 * H * Vp + Vp + T * Bp * Vp)

    vmem = pl.BlockSpec(memory_space=pltpu.MemorySpace.VMEM)
    out_full = pl.pallas_call(
        functools.partial(slu_fused_kernel, T=T, Bp=Bp, H=H),
        out_shape=jax.ShapeDtypeStruct((T * Bp, Vp), jnp.float32),
        in_specs=[vmem] * 6,
        out_specs=vmem,
        # VMEM guardrail; if vocab / T*B ever grow large, tile Stage 3 over rows instead.
        compiler_params=pltpu.CompilerParams(vmem_limit_bytes=32 * 1024 * 1024),
        cost_estimate=pl.CostEstimate(flops=flops,
                                      transcendentals=transcendentals,
                                      bytes_accessed=bytes_accessed),
    )(x_flat, wih_cat, whh_dense, bg, w_out, b_out)

    # Strip batch / vocab padding; row layout matches PyTorch output.view(-1, 2H).
    return out_full.reshape(T, Bp, Vp)[:, :B, :V].reshape(T * B, V)


# ------------------------------- Pure-JAX reference ----------------------------------------
def _ref_lstm_dir(x, wih, whh, b, H):
    def step(carry, x_t):
        h, c = carry
        gates = (jnp.dot(x_t, wih.T, precision=_HIGHEST)
                 + jnp.dot(h, whh.T, precision=_HIGHEST) + b)
        i = jax.nn.sigmoid(gates[:, :H])
        f = jax.nn.sigmoid(gates[:, H:2 * H])
        g = jnp.tanh(gates[:, 2 * H:3 * H])
        o = jax.nn.sigmoid(gates[:, 3 * H:])
        c = f * c + i * g
        h = o * jnp.tanh(c)
        return (h, c), h

    B = x.shape[1]
    init = (jnp.zeros((B, H), jnp.float32), jnp.zeros((B, H), jnp.float32))
    _, hs = lax.scan(step, init, x)
    return hs


def slu_decoder_rnn_ref(inputs, params):
    H = params["whh_f"].shape[1]
    hf = _ref_lstm_dir(inputs, params["wih_f"], params["whh_f"],
                       params["bih_f"] + params["bhh_f"], H)
    hb = _ref_lstm_dir(inputs[::-1], params["wih_b"], params["whh_b"],
                       params["bih_b"] + params["bhh_b"], H)[::-1]
    out = jnp.concatenate([hf, hb], axis=-1)
    flat = out.reshape(-1, 2 * H)
    logits = jnp.dot(flat, params["w_lin"].T, precision=_HIGHEST) + params["b_lin"]
    return jax.nn.log_softmax(logits, axis=1)


# ----------------------------------------- Main --------------------------------------------
if __name__ == "__main__":
    T, B, E, H, V = 8, 2, 16, 32, 64   # seq, batch, enc_hidden_units, hidden_units, voc_size

    key = jax.random.PRNGKey(0)
    ks = jax.random.split(key, 12)
    s = 1.0 / jnp.sqrt(H)  # PyTorch-style uniform(-1/sqrt(H), 1/sqrt(H)) init

    def u(k, shape):
        return jax.random.uniform(k, shape, jnp.float32, -s, s)

    params = {
        "wih_f": u(ks[0], (4 * H, E)), "whh_f": u(ks[1], (4 * H, H)),
        "bih_f": u(ks[2], (4 * H,)),   "bhh_f": u(ks[3], (4 * H,)),
        "wih_b": u(ks[4], (4 * H, E)), "whh_b": u(ks[5], (4 * H, H)),
        "bih_b": u(ks[6], (4 * H,)),   "bhh_b": u(ks[7], (4 * H,)),
        "w_lin": u(ks[8], (V, 2 * H)), "b_lin": u(ks[9], (V,)),
    }

    inputs = jax.random.normal(ks[10], (T, B, E), jnp.float32)

    out = jax.block_until_ready(slu_decoder_rnn(inputs, params))
    ref = jax.block_until_ready(slu_decoder_rnn_ref(inputs, params))

    assert out.shape == (T * B, V), out.shape
    max_err = float(jnp.max(jnp.abs(out - ref)))
    assert jnp.allclose(out, ref, atol=2e-4, rtol=2e-4), max_err
    print("KERNEL_OK")
</pallas_src>

<mosaic_0001>
module attributes {stable_mosaic.version = 11 : i64} {
  func.func @slu_fused_kernel(%arg0: memref<64x16xf32, #tpu.memory_space<vmem>>, %arg1: memref<16x256xf32, #tpu.memory_space<vmem>>, %arg2: memref<64x128xf32, #tpu.memory_space<vmem>>, %arg3: memref<1x256xf32, #tpu.memory_space<vmem>>, %arg4: memref<64x128xf32, #tpu.memory_space<vmem>>, %arg5: memref<1x128xf32, #tpu.memory_space<vmem>>, %arg6: memref<64x128xf32, #tpu.memory_space<vmem>>) attributes {dimension_semantics = [], scalar_prefetch = 0 : i64, scratch_operands = 0 : i64, tpu.core_type = #tpu.core_type<tc>} {
    %c0 = arith.constant 0 : index
    %c0_0 = arith.constant 0 : index
    %0 = vector.load %arg0[%c0, %c0_0] : memref<64x16xf32, #tpu.memory_space<vmem>>, vector<64x16xf32>
    %1 = arith.truncf %0 : vector<64x16xf32> to vector<64x16xbf16>
    %2 = arith.extf %1 : vector<64x16xbf16> to vector<64x16xf32>
    %3 = arith.subf %0, %2 : vector<64x16xf32>
    %4 = arith.truncf %3 : vector<64x16xf32> to vector<64x16xbf16>
    %c0_1 = arith.constant 0 : index
    %c0_2 = arith.constant 0 : index
    %5 = vector.load %arg1[%c0_1, %c0_2] : memref<16x256xf32, #tpu.memory_space<vmem>>, vector<16x256xf32>
    %6 = arith.truncf %5 : vector<16x256xf32> to vector<16x256xbf16>
    %7 = arith.extf %6 : vector<16x256xbf16> to vector<16x256xf32>
    %8 = arith.subf %5, %7 : vector<16x256xf32>
    %9 = arith.truncf %8 : vector<16x256xf32> to vector<16x256xbf16>
    %cst = arith.constant dense<0.000000e+00> : vector<64x256xf32>
    %10 = tpu.matmul %1, %6, %cst {dimension_numbers = #tpu.dot_dimension_numbers<[1], [0], [0], [1], [0, 0, 1, 1], [], []>} : vector<64x16xbf16>, vector<16x256xbf16>, vector<64x256xf32> -> vector<64x256xf32>
    %cst_3 = arith.constant dense<0.000000e+00> : vector<64x256xf32>
    %11 = tpu.matmul %1, %9, %cst_3 {dimension_numbers = #tpu.dot_dimension_numbers<[1], [0], [0], [1], [0, 0, 1, 1], [], []>} : vector<64x16xbf16>, vector<16x256xbf16>, vector<64x256xf32> -> vector<64x256xf32>
    %12 = arith.addf %10, %11 : vector<64x256xf32>
    %cst_4 = arith.constant dense<0.000000e+00> : vector<64x256xf32>
    %13 = tpu.matmul %4, %6, %cst_4 {dimension_numbers = #tpu.dot_dimension_numbers<[1], [0], [0], [1], [0, 0, 1, 1], [], []>} : vector<64x16xbf16>, vector<16x256xbf16>, vector<64x256xf32> -> vector<64x256xf32>
    %14 = arith.addf %12, %13 : vector<64x256xf32>
    %c0_5 = arith.constant 0 : index
    %c0_6 = arith.constant 0 : index
    %15 = vector.load %arg3[%c0_5, %c0_6] : memref<1x256xf32, #tpu.memory_space<vmem>>, vector<1x256xf32>
    %16 = vector.broadcast %15 : vector<1x256xf32> to vector<64x256xf32>
    %17 = arith.addf %14, %16 : vector<64x256xf32>
    %c0_7 = arith.constant 0 : index
    %c0_8 = arith.constant 0 : index
    %18 = vector.load %arg2[%c0_7, %c0_8] : memref<64x128xf32, #tpu.memory_space<vmem>>, vector<64x128xf32>
    %19 = arith.truncf %18 : vector<64x128xf32> to vector<64x128xbf16>
    %20 = arith.extf %19 : vector<64x128xbf16> to vector<64x128xf32>
    %21 = arith.subf %18, %20 : vector<64x128xf32>
    %22 = arith.truncf %21 : vector<64x128xf32> to vector<64x128xbf16>
    %23 = tpu.iota {dimensions = array<i32: 0>} : vector<16x64xi32>
    %24 = tpu.iota {dimensions = array<i32: 1>} : vector<16x64xi32>
    %c8_i32 = arith.constant 8 : i32
    %25 = vector.broadcast %c8_i32 : i32 to vector<16x64xi32>
    %26 = arith.cmpi slt, %23, %25 : vector<16x64xi32>
    %c32_i32 = arith.constant 32 : i32
    %27 = vector.broadcast %c32_i32 : i32 to vector<16x64xi32>
    %28 = arith.cmpi slt, %24, %27 : vector<16x64xi32>
    %29 = arith.xori %26, %28 : vector<16x64xi1>
    %cst_9 = arith.constant dense<true> : vector<16x64xi1>
    %30 = arith.xori %29, %cst_9 : vector<16x64xi1>
    %31 = arith.extui %30 : vector<16x64xi1> to vector<16x64xi32>
    %32 = arith.sitofp %31 : vector<16x64xi32> to vector<16x64xf32>
    %cst_10 = arith.constant 0.000000e+00 : f32
    %33 = vector.broadcast %cst_10 : f32 to vector<16x32xf32>
    %34 = vector.extract_strided_slice %17 {offsets = [0, 0], sizes = [8, 128], strides = [1, 1]} : vector<64x256xf32> to vector<8x128xf32>
    %35 = vector.extract_strided_slice %17 {offsets = [56, 128], sizes = [8, 128], strides = [1, 1]} : vector<64x256xf32> to vector<8x128xf32>
    %36 = tpu.concatenate %34, %35 in 0 : vector<8x128xf32>, vector<8x128xf32> -> vector<16x128xf32>
    %37 = vector.extract_strided_slice %36 {offsets = [0, 0], sizes = [16, 96], strides = [1, 1]} : vector<16x128xf32> to vector<16x96xf32>
    %38 = arith.negf %37 : vector<16x96xf32>
    %39 = math.exp %38 : vector<16x96xf32>
    %cst_11 = arith.constant 1.000000e+00 : f32
    %40 = vector.broadcast %cst_11 : f32 to vector<16x96xf32>
    %41 = arith.addf %40, %39 : vector<16x96xf32>
    %42 = arith.divf %40, %41 : vector<16x96xf32>
    %43 = vector.extract_strided_slice %36 {offsets = [0, 96], sizes = [16, 32], strides = [1, 1]} : vector<16x128xf32> to vector<16x32xf32>
    %44 = math.tanh %43 : vector<16x32xf32>
    %45 = vector.extract_strided_slice %42 {offsets = [0, 0], sizes = [16, 32], strides = [1, 1]} : vector<16x96xf32> to vector<16x32xf32>
    %46 = vector.extract_strided_slice %42 {offsets = [0, 32], sizes = [16, 32], strides = [1, 1]} : vector<16x96xf32> to vector<16x32xf32>
    %47 = vector.extract_strided_slice %42 {offsets = [0, 64], sizes = [16, 32], strides = [1, 1]} : vector<16x96xf32> to vector<16x32xf32>
    %48 = arith.mulf %46, %33 : vector<16x32xf32>
    %49 = arith.mulf %45, %44 : vector<16x32xf32>
    %50 = arith.addf %48, %49 : vector<16x32xf32>
    %51 = math.tanh %50 : vector<16x32xf32>
    %52 = arith.mulf %47, %51 : vector<16x32xf32>
    %53 = vector.extract_strided_slice %52 {offsets = [0, 0], sizes = [8, 32], strides = [1, 1]} : vector<16x32xf32> to vector<8x32xf32>
    %54 = vector.extract_strided_slice %52 {offsets = [8, 0], sizes = [8, 32], strides = [1, 1]} : vector<16x32xf32> to vector<8x32xf32>
    %55 = tpu.concatenate %52, %52 in 1 : vector<16x32xf32>, vector<16x32xf32> -> vector<16x64xf32>
    %56 = arith.mulf %55, %32 : vector<16x64xf32>
    %57 = vector.extract_strided_slice %17 {offsets = [8, 0], sizes = [8, 128], strides = [1, 1]} : vector<64x256xf32> to vector<8x128xf32>
    %58 = vector.extract_strided_slice %17 {offsets = [48, 128], sizes = [8, 128], strides = [1, 1]} : vector<64x256xf32> to vector<8x128xf32>
    %59 = tpu.concatenate %57, %58 in 0 : vector<8x128xf32>, vector<8x128xf32> -> vector<16x128xf32>
    %60 = arith.truncf %56 : vector<16x64xf32> to vector<16x64xbf16>
    %61 = arith.extf %60 : vector<16x64xbf16> to vector<16x64xf32>
    %62 = arith.subf %56, %61 : vector<16x64xf32>
    %63 = arith.truncf %62 : vector<16x64xf32> to vector<16x64xbf16>
    %cst_12 = arith.constant dense<0.000000e+00> : vector<16x128xf32>
    %64 = tpu.matmul %60, %19, %cst_12 {dimension_numbers = #tpu.dot_dimension_numbers<[1], [0], [0], [1], [0, 0, 1, 1], [], []>} : vector<16x64xbf16>, vector<64x128xbf16>, vector<16x128xf32> -> vector<16x128xf32>
    %cst_13 = arith.constant dense<0.000000e+00> : vector<16x128xf32>
    %65 = tpu.matmul %60, %22, %cst_13 {dimension_numbers = #tpu.dot_dimension_numbers<[1], [0], [0], [1], [0, 0, 1, 1], [], []>} : vector<16x64xbf16>, vector<64x128xbf16>, vector<16x128xf32> -> vector<16x128xf32>
    %66 = arith.addf %64, %65 : vector<16x128xf32>
    %cst_14 = arith.constant dense<0.000000e+00> : vector<16x128xf32>
    %67 = tpu.matmul %63, %19, %cst_14 {dimension_numbers = #tpu.dot_dimension_numbers<[1], [0], [0], [1], [0, 0, 1, 1], [], []>} : vector<16x64xbf16>, vector<64x128xbf16>, vector<16x128xf32> -> vector<16x128xf32>
    %68 = arith.addf %66, %67 : vector<16x128xf32>
    %69 = arith.addf %59, %68 : vector<16x128xf32>
    %70 = vector.extract_strided_slice %69 {offsets = [0, 0], sizes = [16, 96], strides = [1, 1]} : vector<16x128xf32> to vector<16x96xf32>
    %71 = arith.negf %70 : vector<16x96xf32>
    %72 = math.exp %71 : vector<16x96xf32>
    %cst_15 = arith.constant 1.000000e+00 : f32
    %73 = vector.broadcast %cst_15 : f32 to vector<16x96xf32>
    %74 = arith.addf %73, %72 : vector<16x96xf32>
    %75 = arith.divf %73, %74 : vector<16x96xf32>
    %76 = vector.extract_strided_slice %69 {offsets = [0, 96], sizes = [16, 32], strides = [1, 1]} : vector<16x128xf32> to vector<16x32xf32>
    %77 = math.tanh %76 : vector<16x32xf32>
    %78 = vector.extract_strided_slice %75 {offsets = [0, 0], sizes = [16, 32], strides = [1, 1]} : vector<16x96xf32> to vector<16x32xf32>
    %79 = vector.extract_strided_slice %75 {offsets = [0, 32], sizes = [16, 32], strides = [1, 1]} : vector<16x96xf32> to vector<16x32xf32>
    %80 = vector.extract_strided_slice %75 {offsets = [0, 64], sizes = [16, 32], strides = [1, 1]} : vector<16x96xf32> to vector<16x32xf32>
    %81 = arith.mulf %79, %50 : vector<16x32xf32>
    %82 = arith.mulf %78, %77 : vector<16x32xf32>
    %83 = arith.addf %81, %82 : vector<16x32xf32>
    %84 = math.tanh %83 : vector<16x32xf32>
    %85 = arith.mulf %80, %84 : vector<16x32xf32>
    %86 = vector.extract_strided_slice %85 {offsets = [0, 0], sizes = [8, 32], strides = [1, 1]} : vector<16x32xf32> to vector<8x32xf32>
    %87 = vector.extract_strided_slice %85 {offsets = [8, 0], sizes = [8, 32], strides = [1, 1]} : vector<16x32xf32> to vector<8x32xf32>
    %88 = tpu.concatenate %85, %85 in 1 : vector<16x32xf32>, vector<16x32xf32> -> vector<16x64xf32>
    %89 = arith.mulf %88, %32 : vector<16x64xf32>
    %90 = vector.extract_strided_slice %17 {offsets = [16, 0], sizes = [8, 128], strides = [1, 1]} : vector<64x256xf32> to vector<8x128xf32>
    %91 = vector.extract_strided_slice %17 {offsets = [40, 128], sizes = [8, 128], strides = [1, 1]} : vector<64x256xf32> to vector<8x128xf32>
    %92 = tpu.concatenate %90, %91 in 0 : vector<8x128xf32>, vector<8x128xf32> -> vector<16x128xf32>
    %93 = arith.truncf %89 : vector<16x64xf32> to vector<16x64xbf16>
    %94 = arith.extf %93 : vector<16x64xbf16> to vector<16x64xf32>
    %95 = arith.subf %89, %94 : vector<16x64xf32>
    %96 = arith.truncf %95 : vector<16x64xf32> to vector<16x64xbf16>
    %cst_16 = arith.constant dense<0.000000e+00> : vector<16x128xf32>
    %97 = tpu.matmul %93, %19, %cst_16 {dimension_numbers = #tpu.dot_dimension_numbers<[1], [0], [0], [1], [0, 0, 1, 1], [], []>} : vector<16x64xbf16>, vector<64x128xbf16>, vector<16x128xf32> -> vector<16x128xf32>
    %cst_17 = arith.constant dense<0.000000e+00> : vector<16x128xf32>
    %98 = tpu.matmul %93, %22, %cst_17 {dimension_numbers = #tpu.dot_dimension_numbers<[1], [0], [0], [1], [0, 0, 1, 1], [], []>} : vector<16x64xbf16>, vector<64x128xbf16>, vector<16x128xf32> -> vector<16x128xf32>
    %99 = arith.addf %97, %98 : vector<16x128xf32>
    %cst_18 = arith.constant dense<0.000000e+00> : vector<16x128xf32>
    %100 = tpu.matmul %96, %19, %cst_18 {dimension_numbers = #tpu.dot_dimension_numbers<[1], [0], [0], [1], [0, 0, 1, 1], [], []>} : vector<16x64xbf16>, vector<64x128xbf16>, vector<16x128xf32> -> vector<16x128xf32>
    %101 = arith.addf %99, %100 : vector<16x128xf32>
    %102 = arith.addf %92, %101 : vector<16x128xf32>
    %103 = vector.extract_strided_slice %102 {offsets = [0, 0], sizes = [16, 96], strides = [1, 1]} : vector<16x128xf32> to vector<16x96xf32>
    %104 = arith.negf %103 : vector<16x96xf32>
    %105 = math.exp %104 : vector<16x96xf32>
    %cst_19 = arith.constant 1.000000e+00 : f32
    %106 = vector.broadcast %cst_19 : f32 to vector<16x96xf32>
    %107 = arith.addf %106, %105 : vector<16x96xf32>
    %108 = arith.divf %106, %107 : vector<16x96xf32>
    %109 = vector.extract_strided_slice %102 {offsets = [0, 96], sizes = [16, 32], strides = [1, 1]} : vector<16x128xf32> to vector<16x32xf32>
    %110 = math.tanh %109 : vector<16x32xf32>
    %111 = vector.extract_strided_slice %108 {offsets = [0, 0], sizes = [16, 32], strides = [1, 1]} : vector<16x96xf32> to vector<16x32xf32>
    %112 = vector.extract_strided_slice %108 {offsets = [0, 32], sizes = [16, 32], strides = [1, 1]} : vector<16x96xf32> to vector<16x32xf32>
    %113 = vector.extract_strided_slice %108 {offsets = [0, 64], sizes = [16, 32], strides = [1, 1]} : vector<16x96xf32> to vector<16x32xf32>
    %114 = arith.mulf %112, %83 : vector<16x32xf32>
    %115 = arith.mulf %111, %110 : vector<16x32xf32>
    %116 = arith.addf %114, %115 : vector<16x32xf32>
    %117 = math.tanh %116 : vector<16x32xf32>
    %118 = arith.mulf %113, %117 : vector<16x32xf32>
    %119 = vector.extract_strided_slice %118 {offsets = [0, 0], sizes = [8, 32], strides = [1, 1]} : vector<16x32xf32> to vector<8x32xf32>
    %120 = vector.extract_strided_slice %118 {offsets = [8, 0], sizes = [8, 32], strides = [1, 1]} : vector<16x32xf32> to vector<8x32xf32>
    %121 = tpu.concatenate %118, %118 in 1 : vector<16x32xf32>, vector<16x32xf32> -> vector<16x64xf32>
    %122 = arith.mulf %121, %32 : vector<16x64xf32>
    %123 = vector.extract_strided_slice %17 {offsets = [24, 0], sizes = [8, 128], strides = [1, 1]} : vector<64x256xf32> to vector<8x128xf32>
    %124 = vector.extract_strided_slice %17 {offsets = [32, 128], sizes = [8, 128], strides = [1, 1]} : vector<64x256xf32> to vector<8x128xf32>
    %125 = tpu.concatenate %123, %124 in 0 : vector<8x128xf32>, vector<8x128xf32> -> vector<16x128xf32>
    %126 = arith.truncf %122 : vector<16x64xf32> to vector<16x64xbf16>
    %127 = arith.extf %126 : vector<16x64xbf16> to vector<16x64xf32>
    %128 = arith.subf %122, %127 : vector<16x64xf32>
    %129 = arith.truncf %128 : vector<16x64xf32> to vector<16x64xbf16>
    %cst_20 = arith.constant dense<0.000000e+00> : vector<16x128xf32>
    %130 = tpu.matmul %126, %19, %cst_20 {dimension_numbers = #tpu.dot_dimension_numbers<[1], [0], [0], [1], [0, 0, 1, 1], [], []>} : vector<16x64xbf16>, vector<64x128xbf16>, vector<16x128xf32> -> vector<16x128xf32>
    %cst_21 = arith.constant dense<0.000000e+00> : vector<16x128xf32>
    %131 = tpu.matmul %126, %22, %cst_21 {dimension_numbers = #tpu.dot_dimension_numbers<[1], [0], [0], [1], [0, 0, 1, 1], [], []>} : vector<16x64xbf16>, vector<64x128xbf16>, vector<16x128xf32> -> vector<16x128xf32>
    %132 = arith.addf %130, %131 : vector<16x128xf32>
    %cst_22 = arith.constant dense<0.000000e+00> : vector<16x128xf32>
    %133 = tpu.matmul %129, %19, %cst_22 {dimension_numbers = #tpu.dot_dimension_numbers<[1], [0], [0], [1], [0, 0, 1, 1], [], []>} : vector<16x64xbf16>, vector<64x128xbf16>, vector<16x128xf32> -> vector<16x128xf32>
    %134 = arith.addf %132, %133 : vector<16x128xf32>
    %135 = arith.addf %125, %134 : vector<16x128xf32>
    %136 = vector.extract_strided_slice %135 {offsets = [0, 0], sizes = [16, 96], strides = [1, 1]} : vector<16x128xf32> to vector<16x96xf32>
    %137 = arith.negf %136 : vector<16x96xf32>
    %138 = math.exp %137 : vector<16x96xf32>
    %cst_23 = arith.constant 1.000000e+00 : f32
    %139 = vector.broadcast %cst_23 : f32 to vector<16x96xf32>
    %140 = arith.addf %139, %138 : vector<16x96xf32>
    %141 = arith.divf %139, %140 : vector<16x96xf32>
    %142 = vector.extract_strided_slice %135 {offsets = [0, 96], sizes = [16, 32], strides = [1, 1]} : vector<16x128xf32> to vector<16x32xf32>
    %143 = math.tanh %142 : vector<16x32xf32>
    %144 = vector.extract_strided_slice %141 {offsets = [0, 0], sizes = [16, 32], strides = [1, 1]} : vector<16x96xf32> to vector<16x32xf32>
    %145 = vector.extract_strided_slice %141 {offsets = [0, 32], sizes = [16, 32], strides = [1, 1]} : vector<16x96xf32> to vector<16x32xf32>
    %146 = vector.extract_strided_slice %141 {offsets = [0, 64], sizes = [16, 32], strides = [1, 1]} : vector<16x96xf32> to vector<16x32xf32>
    %147 = arith.mulf %145, %116 : vector<16x32xf32>
    %148 = arith.mulf %144, %143 : vector<16x32xf32>
    %149 = arith.addf %147, %148 : vector<16x32xf32>
    %150 = math.tanh %149 : vector<16x32xf32>
    %151 = arith.mulf %146, %150 : vector<16x32xf32>
    %152 = vector.extract_strided_slice %151 {offsets = [0, 0], sizes = [8, 32], strides = [1, 1]} : vector<16x32xf32> to vector<8x32xf32>
    %153 = vector.extract_strided_slice %151 {offsets = [8, 0], sizes = [8, 32], strides = [1, 1]} : vector<16x32xf32> to vector<8x32xf32>
    %154 = tpu.concatenate %151, %151 in 1 : vector<16x32xf32>, vector<16x32xf32> -> vector<16x64xf32>
    %155 = arith.mulf %154, %32 : vector<16x64xf32>
    %156 = vector.extract_strided_slice %17 {offsets = [32, 0], sizes = [8, 128], strides = [1, 1]} : vector<64x256xf32> to vector<8x128xf32>
    %157 = vector.extract_strided_slice %17 {offsets = [24, 128], sizes = [8, 128], strides = [1, 1]} : vector<64x256xf32> to vector<8x128xf32>
    %158 = tpu.concatenate %156, %157 in 0 : vector<8x128xf32>, vector<8x128xf32> -> vector<16x128xf32>
    %159 = arith.truncf %155 : vector<16x64xf32> to vector<16x64xbf16>
    %160 = arith.extf %159 : vector<16x64xbf16> to vector<16x64xf32>
    %161 = arith.subf %155, %160 : vector<16x64xf32>
    %162 = arith.truncf %161 : vector<16x64xf32> to vector<16x64xbf16>
    %cst_24 = arith.constant dense<0.000000e+00> : vector<16x128xf32>
    %163 = tpu.matmul %159, %19, %cst_24 {dimension_numbers = #tpu.dot_dimension_numbers<[1], [0], [0], [1], [0, 0, 1, 1], [], []>} : vector<16x64xbf16>, vector<64x128xbf16>, vector<16x128xf32> -> vector<16x128xf32>
    %cst_25 = arith.constant dense<0.000000e+00> : vector<16x128xf32>
    %164 = tpu.matmul %159, %22, %cst_25 {dimension_numbers = #tpu.dot_dimension_numbers<[1], [0], [0], [1], [0, 0, 1, 1], [], []>} : vector<16x64xbf16>, vector<64x128xbf16>, vector<16x128xf32> -> vector<16x128xf32>
    %165 = arith.addf %163, %164 : vector<16x128xf32>
    %cst_26 = arith.constant dense<0.000000e+00> : vector<16x128xf32>
    %166 = tpu.matmul %162, %19, %cst_26 {dimension_numbers = #tpu.dot_dimension_numbers<[1], [0], [0], [1], [0, 0, 1, 1], [], []>} : vector<16x64xbf16>, vector<64x128xbf16>, vector<16x128xf32> -> vector<16x128xf32>
    %167 = arith.addf %165, %166 : vector<16x128xf32>
    %168 = arith.addf %158, %167 : vector<16x128xf32>
    %169 = vector.extract_strided_slice %168 {offsets = [0, 0], sizes = [16, 96], strides = [1, 1]} : vector<16x128xf32> to vector<16x96xf32>
    %170 = arith.negf %169 : vector<16x96xf32>
    %171 = math.exp %170 : vector<16x96xf32>
    %cst_27 = arith.constant 1.000000e+00 : f32
    %172 = vector.broadcast %cst_27 : f32 to vector<16x96xf32>
    %173 = arith.addf %172, %171 : vector<16x96xf32>
    %174 = arith.divf %172, %173 : vector<16x96xf32>
    %175 = vector.extract_strided_slice %168 {offsets = [0, 96], sizes = [16, 32], strides = [1, 1]} : vector<16x128xf32> to vector<16x32xf32>
    %176 = math.tanh %175 : vector<16x32xf32>
    %177 = vector.extract_strided_slice %174 {offsets = [0, 0], sizes = [16, 32], strides = [1, 1]} : vector<16x96xf32> to vector<16x32xf32>
    %178 = vector.extract_strided_slice %174 {offsets = [0, 32], sizes = [16, 32], strides = [1, 1]} : vector<16x96xf32> to vector<16x32xf32>
    %179 = vector.extract_strided_slice %174 {offsets = [0, 64], sizes = [16, 32], strides = [1, 1]} : vector<16x96xf32> to vector<16x32xf32>
    %180 = arith.mulf %178, %149 : vector<16x32xf32>
    %181 = arith.mulf %177, %176 : vector<16x32xf32>
    %182 = arith.addf %180, %181 : vector<16x32xf32>
    %183 = math.tanh %182 : vector<16x32xf32>
    %184 = arith.mulf %179, %183 : vector<16x32xf32>
    %185 = vector.extract_strided_slice %184 {offsets = [0, 0], sizes = [8, 32], strides = [1, 1]} : vector<16x32xf32> to vector<8x32xf32>
    %186 = vector.extract_strided_slice %184 {offsets = [8, 0], sizes = [8, 32], strides = [1, 1]} : vector<16x32xf32> to vector<8x32xf32>
    %187 = tpu.concatenate %184, %184 in 1 : vector<16x32xf32>, vector<16x32xf32> -> vector<16x64xf32>
    %188 = arith.mulf %187, %32 : vector<16x64xf32>
    %189 = vector.extract_strided_slice %17 {offsets = [40, 0], sizes = [8, 128], strides = [1, 1]} : vector<64x256xf32> to vector<8x128xf32>
    %190 = vector.extract_strided_slice %17 {offsets = [16, 128], sizes = [8, 128], strides = [1, 1]} : vector<64x256xf32> to vector<8x128xf32>
    %191 = tpu.concatenate %189, %190 in 0 : vector<8x128xf32>, vector<8x128xf32> -> vector<16x128xf32>
    %192 = arith.truncf %188 : vector<16x64xf32> to vector<16x64xbf16>
    %193 = arith.extf %192 : vector<16x64xbf16> to vector<16x64xf32>
    %194 = arith.subf %188, %193 : vector<16x64xf32>
    %195 = arith.truncf %194 : vector<16x64xf32> to vector<16x64xbf16>
    %cst_28 = arith.constant dense<0.000000e+00> : vector<16x128xf32>
    %196 = tpu.matmul %192, %19, %cst_28 {dimension_numbers = #tpu.dot_dimension_numbers<[1], [0], [0], [1], [0, 0, 1, 1], [], []>} : vector<16x64xbf16>, vector<64x128xbf16>, vector<16x128xf32> -> vector<16x128xf32>
    %cst_29 = arith.constant dense<0.000000e+00> : vector<16x128xf32>
    %197 = tpu.matmul %192, %22, %cst_29 {dimension_numbers = #tpu.dot_dimension_numbers<[1], [0], [0], [1], [0, 0, 1, 1], [], []>} : vector<16x64xbf16>, vector<64x128xbf16>, vector<16x128xf32> -> vector<16x128xf32>
    %198 = arith.addf %196, %197 : vector<16x128xf32>
    %cst_30 = arith.constant dense<0.000000e+00> : vector<16x128xf32>
    %199 = tpu.matmul %195, %19, %cst_30 {dimension_numbers = #tpu.dot_dimension_numbers<[1], [0], [0], [1], [0, 0, 1, 1], [], []>} : vector<16x64xbf16>, vector<64x128xbf16>, vector<16x128xf32> -> vector<16x128xf32>
    %200 = arith.addf %198, %199 : vector<16x128xf32>
    %201 = arith.addf %191, %200 : vector<16x128xf32>
    %202 = vector.extract_strided_slice %201 {offsets = [0, 0], sizes = [16, 96], strides = [1, 1]} : vector<16x128xf32> to vector<16x96xf32>
    %203 = arith.negf %202 : vector<16x96xf32>
    %204 = math.exp %203 : vector<16x96xf32>
    %cst_31 = arith.constant 1.000000e+00 : f32
    %205 = vector.broadcast %cst_31 : f32 to vector<16x96xf32>
    %206 = arith.addf %205, %204 : vector<16x96xf32>
    %207 = arith.divf %205, %206 : vector<16x96xf32>
    %208 = vector.extract_strided_slice %201 {offsets = [0, 96], sizes = [16, 32], strides = [1, 1]} : vector<16x128xf32> to vector<16x32xf32>
    %209 = math.tanh %208 : vector<16x32xf32>
    %210 = vector.extract_strided_slice %207 {offsets = [0, 0], sizes = [16, 32], strides = [1, 1]} : vector<16x96xf32> to vector<16x32xf32>
    %211 = vector.extract_strided_slice %207 {offsets = [0, 32], sizes = [16, 32], strides = [1, 1]} : vector<16x96xf32> to vector<16x32xf32>
    %212 = vector.extract_strided_slice %207 {offsets = [0, 64], sizes = [16, 32], strides = [1, 1]} : vector<16x96xf32> to vector<16x32xf32>
    %213 = arith.mulf %211, %182 : vector<16x32xf32>
    %214 = arith.mulf %210, %209 : vector<16x32xf32>
    %215 = arith.addf %213, %214 : vector<16x32xf32>
    %216 = math.tanh %215 : vector<16x32xf32>
    %217 = arith.mulf %212, %216 : vector<16x32xf32>
    %218 = vector.extract_strided_slice %217 {offsets = [0, 0], sizes = [8, 32], strides = [1, 1]} : vector<16x32xf32> to vector<8x32xf32>
    %219 = vector.extract_strided_slice %217 {offsets = [8, 0], sizes = [8, 32], strides = [1, 1]} : vector<16x32xf32> to vector<8x32xf32>
    %220 = tpu.concatenate %217, %217 in 1 : vector<16x32xf32>, vector<16x32xf32> -> vector<16x64xf32>
    %221 = arith.mulf %220, %32 : vector<16x64xf32>
    %222 = vector.extract_strided_slice %17 {offsets = [48, 0], sizes = [8, 128], strides = [1, 1]} : vector<64x256xf32> to vector<8x128xf32>
    %223 = vector.extract_strided_slice %17 {offsets = [8, 128], sizes = [8, 128], strides = [1, 1]} : vector<64x256xf32> to vector<8x128xf32>
    %224 = tpu.concatenate %222, %223 in 0 : vector<8x128xf32>, vector<8x128xf32> -> vector<16x128xf32>
    %225 = arith.truncf %221 : vector<16x64xf32> to vector<16x64xbf16>
    %226 = arith.extf %225 : vector<16x64xbf16> to vector<16x64xf32>
    %227 = arith.subf %221, %226 : vector<16x64xf32>
    %228 = arith.truncf %227 : vector<16x64xf32> to vector<16x64xbf16>
    %cst_32 = arith.constant dense<0.000000e+00> : vector<16x128xf32>
    %229 = tpu.matmul %225, %19, %cst_32 {dimension_numbers = #tpu.dot_dimension_numbers<[1], [0], [0], [1], [0, 0, 1, 1], [], []>} : vector<16x64xbf16>, vector<64x128xbf16>, vector<16x128xf32> -> vector<16x128xf32>
    %cst_33 = arith.constant dense<0.000000e+00> : vector<16x128xf32>
    %230 = tpu.matmul %225, %22, %cst_33 {dimension_numbers = #tpu.dot_dimension_numbers<[1], [0], [0], [1], [0, 0, 1, 1], [], []>} : vector<16x64xbf16>, vector<64x128xbf16>, vector<16x128xf32> -> vector<16x128xf32>
    %231 = arith.addf %229, %230 : vector<16x128xf32>
    %cst_34 = arith.constant dense<0.000000e+00> : vector<16x128xf32>
    %232 = tpu.matmul %228, %19, %cst_34 {dimension_numbers = #tpu.dot_dimension_numbers<[1], [0], [0], [1], [0, 0, 1, 1], [], []>} : vector<16x64xbf16>, vector<64x128xbf16>, vector<16x128xf32> -> vector<16x128xf32>
    %233 = arith.addf %231, %232 : vector<16x128xf32>
    %234 = arith.addf %224, %233 : vector<16x128xf32>
    %235 = vector.extract_strided_slice %234 {offsets = [0, 0], sizes = [16, 96], strides = [1, 1]} : vector<16x128xf32> to vector<16x96xf32>
    %236 = arith.negf %235 : vector<16x96xf32>
    %237 = math.exp %236 : vector<16x96xf32>
    %cst_35 = arith.constant 1.000000e+00 : f32
    %238 = vector.broadcast %cst_35 : f32 to vector<16x96xf32>
    %239 = arith.addf %238, %237 : vector<16x96xf32>
    %240 = arith.divf %238, %239 : vector<16x96xf32>
    %241 = vector.extract_strided_slice %234 {offsets = [0, 96], sizes = [16, 32], strides = [1, 1]} : vector<16x128xf32> to vector<16x32xf32>
    %242 = math.tanh %241 : vector<16x32xf32>
    %243 = vector.extract_strided_slice %240 {offsets = [0, 0], sizes = [16, 32], strides = [1, 1]} : vector<16x96xf32> to vector<16x32xf32>
    %244 = vector.extract_strided_slice %240 {offsets = [0, 32], sizes = [16, 32], strides = [1, 1]} : vector<16x96xf32> to vector<16x32xf32>
    %245 = vector.extract_strided_slice %240 {offsets = [0, 64], sizes = [16, 32], strides = [1, 1]} : vector<16x96xf32> to vector<16x32xf32>
    %246 = arith.mulf %244, %215 : vector<16x32xf32>
    %247 = arith.mulf %243, %242 : vector<16x32xf32>
    %248 = arith.addf %246, %247 : vector<16x32xf32>
    %249 = math.tanh %248 : vector<16x32xf32>
    %250 = arith.mulf %245, %249 : vector<16x32xf32>
    %251 = vector.extract_strided_slice %250 {offsets = [0, 0], sizes = [8, 32], strides = [1, 1]} : vector<16x32xf32> to vector<8x32xf32>
    %252 = vector.extract_strided_slice %250 {offsets = [8, 0], sizes = [8, 32], strides = [1, 1]} : vector<16x32xf32> to vector<8x32xf32>
    %253 = tpu.concatenate %250, %250 in 1 : vector<16x32xf32>, vector<16x32xf32> -> vector<16x64xf32>
    %254 = arith.mulf %253, %32 : vector<16x64xf32>
    %255 = vector.extract_strided_slice %17 {offsets = [56, 0], sizes = [8, 128], strides = [1, 1]} : vector<64x256xf32> to vector<8x128xf32>
    %256 = vector.extract_strided_slice %17 {offsets = [0, 128], sizes = [8, 128], strides = [1, 1]} : vector<64x256xf32> to vector<8x128xf32>
    %257 = tpu.concatenate %255, %256 in 0 : vector<8x128xf32>, vector<8x128xf32> -> vector<16x128xf32>
    %258 = arith.truncf %254 : vector<16x64xf32> to vector<16x64xbf16>
    %259 = arith.extf %258 : vector<16x64xbf16> to vector<16x64xf32>
    %260 = arith.subf %254, %259 : vector<16x64xf32>
    %261 = arith.truncf %260 : vector<16x64xf32> to vector<16x64xbf16>
    %cst_36 = arith.constant dense<0.000000e+00> : vector<16x128xf32>
    %262 = tpu.matmul %258, %19, %cst_36 {dimension_numbers = #tpu.dot_dimension_numbers<[1], [0], [0], [1], [0, 0, 1, 1], [], []>} : vector<16x64xbf16>, vector<64x128xbf16>, vector<16x128xf32> -> vector<16x128xf32>
    %cst_37 = arith.constant dense<0.000000e+00> : vector<16x128xf32>
    %263 = tpu.matmul %258, %22, %cst_37 {dimension_numbers = #tpu.dot_dimension_numbers<[1], [0], [0], [1], [0, 0, 1, 1], [], []>} : vector<16x64xbf16>, vector<64x128xbf16>, vector<16x128xf32> -> vector<16x128xf32>
    %264 = arith.addf %262, %263 : vector<16x128xf32>
    %cst_38 = arith.constant dense<0.000000e+00> : vector<16x128xf32>
    %265 = tpu.matmul %261, %19, %cst_38 {dimension_numbers = #tpu.dot_dimension_numbers<[1], [0], [0], [1], [0, 0, 1, 1], [], []>} : vector<16x64xbf16>, vector<64x128xbf16>, vector<16x128xf32> -> vector<16x128xf32>
    %266 = arith.addf %264, %265 : vector<16x128xf32>
    %267 = arith.addf %257, %266 : vector<16x128xf32>
    %268 = vector.extract_strided_slice %267 {offsets = [0, 0], sizes = [16, 96], strides = [1, 1]} : vector<16x128xf32> to vector<16x96xf32>
    %269 = arith.negf %268 : vector<16x96xf32>
    %270 = math.exp %269 : vector<16x96xf32>
    %cst_39 = arith.constant 1.000000e+00 : f32
    %271 = vector.broadcast %cst_39 : f32 to vector<16x96xf32>
    %272 = arith.addf %271, %270 : vector<16x96xf32>
    %273 = arith.divf %271, %272 : vector<16x96xf32>
    %274 = vector.extract_strided_slice %267 {offsets = [0, 96], sizes = [16, 32], strides = [1, 1]} : vector<16x128xf32> to vector<16x32xf32>
    %275 = math.tanh %274 : vector<16x32xf32>
    %276 = vector.extract_strided_slice %273 {offsets = [0, 0], sizes = [16, 32], strides = [1, 1]} : vector<16x96xf32> to vector<16x32xf32>
    %277 = vector.extract_strided_slice %273 {offsets = [0, 32], sizes = [16, 32], strides = [1, 1]} : vector<16x96xf32> to vector<16x32xf32>
    %278 = vector.extract_strided_slice %273 {offsets = [0, 64], sizes = [16, 32], strides = [1, 1]} : vector<16x96xf32> to vector<16x32xf32>
    %279 = arith.mulf %277, %248 : vector<16x32xf32>
    %280 = arith.mulf %276, %275 : vector<16x32xf32>
    %281 = arith.addf %279, %280 : vector<16x32xf32>
    %282 = math.tanh %281 : vector<16x32xf32>
    %283 = arith.mulf %278, %282 : vector<16x32xf32>
    %284 = vector.extract_strided_slice %283 {offsets = [0, 0], sizes = [8, 32], strides = [1, 1]} : vector<16x32xf32> to vector<8x32xf32>
    %285 = vector.extract_strided_slice %283 {offsets = [8, 0], sizes = [8, 32], strides = [1, 1]} : vector<16x32xf32> to vector<8x32xf32>
    %286 = tpu.concatenate %53, %285 in 1 : vector<8x32xf32>, vector<8x32xf32> -> vector<8x64xf32>
    %287 = tpu.concatenate %86, %252 in 1 : vector<8x32xf32>, vector<8x32xf32> -> vector<8x64xf32>
    %288 = tpu.concatenate %119, %219 in 1 : vector<8x32xf32>, vector<8x32xf32> -> vector<8x64xf32>
    %289 = tpu.concatenate %152, %186 in 1 : vector<8x32xf32>, vector<8x32xf32> -> vector<8x64xf32>
    %290 = tpu.concatenate %185, %153 in 1 : vector<8x32xf32>, vector<8x32xf32> -> vector<8x64xf32>
    %291 = tpu.concatenate %218, %120 in 1 : vector<8x32xf32>, vector<8x32xf32> -> vector<8x64xf32>
    %292 = tpu.concatenate %251, %87 in 1 : vector<8x32xf32>, vector<8x32xf32> -> vector<8x64xf32>
    %293 = tpu.concatenate %284, %54 in 1 : vector<8x32xf32>, vector<8x32xf32> -> vector<8x64xf32>
    %294 = tpu.concatenate %286, %287, %288, %289, %290, %291, %292, %293 in 0 : vector<8x64xf32>, vector<8x64xf32>, vector<8x64xf32>, vector<8x64xf32>, vector<8x64xf32>, vector<8x64xf32>, vector<8x64xf32>, vector<8x64xf32> -> vector<64x64xf32>
    %295 = arith.truncf %294 : vector<64x64xf32> to vector<64x64xbf16>
    %296 = arith.extf %295 : vector<64x64xbf16> to vector<64x64xf32>
    %297 = arith.subf %294, %296 : vector<64x64xf32>
    %298 = arith.truncf %297 : vector<64x64xf32> to vector<64x64xbf16>
    %c0_40 = arith.constant 0 : index
    %c0_41 = arith.constant 0 : index
    %299 = vector.load %arg4[%c0_40, %c0_41] : memref<64x128xf32, #tpu.memory_space<vmem>>, vector<64x128xf32>
    %300 = arith.truncf %299 : vector<64x128xf32> to vector<64x128xbf16>
    %301 = arith.extf %300 : vector<64x128xbf16> to vector<64x128xf32>
    %302 = arith.subf %299, %301 : vector<64x128xf32>
    %303 = arith.truncf %302 : vector<64x128xf32> to vector<64x128xbf16>
    %cst_42 = arith.constant dense<0.000000e+00> : vector<64x128xf32>
    %304 = tpu.matmul %295, %300, %cst_42 {dimension_numbers = #tpu.dot_dimension_numbers<[1], [0], [0], [1], [0, 0, 1, 1], [], []>} : vector<64x64xbf16>, vector<64x128xbf16>, vector<64x128xf32> -> vector<64x128xf32>
    %cst_43 = arith.constant dense<0.000000e+00> : vector<64x128xf32>
    %305 = tpu.matmul %295, %303, %cst_43 {dimension_numbers = #tpu.dot_dimension_numbers<[1], [0], [0], [1], [0, 0, 1, 1], [], []>} : vector<64x64xbf16>, vector<64x128xbf16>, vector<64x128xf32> -> vector<64x128xf32>
    %306 = arith.addf %304, %305 : vector<64x128xf32>
    %cst_44 = arith.constant dense<0.000000e+00> : vector<64x128xf32>
    %307 = tpu.matmul %298, %300, %cst_44 {dimension_numbers = #tpu.dot_dimension_numbers<[1], [0], [0], [1], [0, 0, 1, 1], [], []>} : vector<64x64xbf16>, vector<64x128xbf16>, vector<64x128xf32> -> vector<64x128xf32>
    %308 = arith.addf %306, %307 : vector<64x128xf32>
    %c0_45 = arith.constant 0 : index
    %c0_46 = arith.constant 0 : index
    %309 = vector.load %arg5[%c0_45, %c0_46] : memref<1x128xf32, #tpu.memory_space<vmem>>, vector<1x128xf32>
    %310 = vector.broadcast %309 : vector<1x128xf32> to vector<64x128xf32>
    %311 = arith.addf %308, %310 : vector<64x128xf32>
    %cst_47 = arith.constant dense<0xFF800000> : vector<64xf32>
    %312 = vector.multi_reduction <maximumf>, %311, %cst_47 [1] : vector<64x128xf32> to vector<64xf32>
    %313 = vector.shape_cast %312 : vector<64xf32> to vector<64x1xf32>
    %314 = vector.broadcast %313 : vector<64x1xf32> to vector<64x128xf32>
    %315 = arith.subf %311, %314 : vector<64x128xf32>
    %316 = math.exp %315 : vector<64x128xf32>
    %cst_48 = arith.constant dense<0.000000e+00> : vector<64xf32>
    %317 = vector.multi_reduction <add>, %316, %cst_48 [1] : vector<64x128xf32> to vector<64xf32>
    %318 = vector.shape_cast %317 : vector<64xf32> to vector<64x1xf32>
    %319 = math.log %318 : vector<64x1xf32>
    %320 = vector.broadcast %319 : vector<64x1xf32> to vector<64x128xf32>
    %321 = arith.subf %315, %320 : vector<64x128xf32>
    %c0_49 = arith.constant 0 : index
    %c0_50 = arith.constant 0 : index
    %322 = vector.load %arg6[%c0_49, %c0_50] : memref<64x128xf32, #tpu.memory_space<vmem>>, vector<64x128xf32>
    tpu.vector_store %arg6[%c0_49, %c0_50], %321 {strides = array<i32>} : memref<64x128xf32, #tpu.memory_space<vmem>>, vector<64x128xf32>,
    return
  }
}

</mosaic_0001>

<llo_original>
// kernel: slu_decoder_rnn.1
$region0: #{slu_decoder_rnn.1}
  #allocation0 [shape = 'u32[]', space=smem, size = 0x4, offset = 0x4, fixed_abs, tag = 'smem constant byte address 0x4 - core index']
  #allocation1 [shape = 'u32[144,128]{1,0:T(1,128)}', space=vmem, size = 0x12000, scoped, tag = 'internal scratch']
  %s0 = inlined_call_operand.vmem [shape: f32[64,16], index: 0, kind: input, shape index: {}]
  %s1 = inlined_call_operand.vmem [shape: f32[16,256], index: 1, kind: input, shape index: {}]
  %s2 = inlined_call_operand.vmem [shape: f32[64,128], index: 2, kind: input, shape index: {}]
  %s3 = inlined_call_operand.vmem [shape: f32[1,256], index: 3, kind: input, shape index: {}]
  %s4 = inlined_call_operand.vmem [shape: f32[64,128], index: 4, kind: input, shape index: {}]
  %s5 = inlined_call_operand.vmem [shape: f32[1,128], index: 5, kind: input, shape index: {}]
  %s6 = inlined_call_operand.vmem [shape: f32[64,128], index: 6, kind: output, shape index: {}]
  %s7 = sld [smem:[#allocation0]]
  $region34: #{slu_decoder_rnn.1} parent=0
    _
  %s9 = ssub.s32 1, %s7
  %s10 = scalar_select 0, %s9, %s7
  // Predicated region
  $region2: #{slu_decoder_rnn.1} parent=0 // pred_check
    _
  $region3: #{slu_decoder_rnn.1} parent=0 // pred_check_branch
    %12 = sbr.rel (0) target = $region5
  $region4: #{slu_decoder_rnn.1} parent=0 // pred_region
    _
  $region5: #{slu_decoder_rnn.1} parent=0 // pred_fallthru
    _
  // Predicated region
  $region6: #{slu_decoder_rnn.1} parent=0 // pred_check
    _
  $region7: #{slu_decoder_rnn.1} parent=0 // pred_check_branch
    %14 = sbr.rel (0) target = $region9
  $region8: #{slu_decoder_rnn.1} parent=0 // pred_region
    _
  $region9: #{slu_decoder_rnn.1} parent=0 // pred_fallthru
    _
  // Predicated region
  $region10: #{slu_decoder_rnn.1} parent=0 // pred_check
    _
  $region11: #{slu_decoder_rnn.1} parent=0 // pred_check_branch
    %16 = sbr.rel (0) target = $region13
  $region12: #{slu_decoder_rnn.1} parent=0 // pred_region
    _
  $region13: #{slu_decoder_rnn.1} parent=0 // pred_fallthru
    _
  // Predicated region
  $region14: #{slu_decoder_rnn.1} parent=0 // pred_check
    _
  $region15: #{slu_decoder_rnn.1} parent=0 // pred_check_branch
    %18 = sbr.rel (0) target = $region17
  $region16: #{slu_decoder_rnn.1} parent=0 // pred_region
    _
  $region17: #{slu_decoder_rnn.1} parent=0 // pred_fallthru
    _
  // Predicated region
  $region18: #{slu_decoder_rnn.1} parent=0 // pred_check
    _
  $region19: #{slu_decoder_rnn.1} parent=0 // pred_check_branch
    %20 = sbr.rel (0) target = $region21
  $region20: #{slu_decoder_rnn.1} parent=0 // pred_region
    _
  $region21: #{slu_decoder_rnn.1} parent=0 // pred_fallthru
    _
  // Predicated region
  $region22: #{slu_decoder_rnn.1} parent=0 // pred_check
    _
  $region23: #{slu_decoder_rnn.1} parent=0 // pred_check_branch
    %22 = sbr.rel (0) target = $region25
  $region24: #{slu_decoder_rnn.1} parent=0 // pred_region
    _
  $region25: #{slu_decoder_rnn.1} parent=0 // pred_fallthru
    _
  %v24 = vld [vmem:[%s0] sm:$0xff]
  %v25 = vld [vmem:[%s0 + $0x8] sm:$0xff]
  %v26 = vld [vmem:[%s0 + $0x10] sm:$0xff]
  %v27 = vld [vmem:[%s0 + $0x18] sm:$0xff]
  %v28 = vld [vmem:[%s0 + $0x20] sm:$0xff]
  %v29 = vld [vmem:[%s0 + $0x28] sm:$0xff]
  %v30 = vld [vmem:[%s0 + $0x30] sm:$0xff]
  %v31 = vld [vmem:[%s0 + $0x38] sm:$0xff]
  %v32 = vpack.c.bf16 %v25, %v24
  %v33 = vpack.c.bf16 %v27, %v26
  %v34 = vpack.c.bf16 %v29, %v28
  %v35 = vpack.c.bf16 %v31, %v30
  %v36 = vunpack.c.l.bf16 %v32
  %v37 = vunpack.c.h.bf16 %v32
  %v38 = vunpack.c.l.bf16 %v33
  %v39 = vunpack.c.h.bf16 %v33
  %v40 = vunpack.c.l.bf16 %v34
  %v41 = vunpack.c.h.bf16 %v34
  %v42 = vunpack.c.l.bf16 %v35
  %v43 = vunpack.c.h.bf16 %v35
  %v44 = vsub.f32 %v24, %v36
  %v45 = vsub.f32 %v25, %v37
  %v46 = vsub.f32 %v26, %v38
  %v47 = vsub.f32 %v27, %v39
  %v48 = vsub.f32 %v28, %v40
  %v49 = vsub.f32 %v29, %v41
  %v50 = vsub.f32 %v30, %v42
  %v51 = vsub.f32 %v31, %v43
  %v52 = vpack.c.bf16 %v45, %v44
  %v53 = vpack.c.bf16 %v47, %v46
  %v54 = vpack.c.bf16 %v49, %v48
  %v55 = vpack.c.bf16 %v51, %v50
  %v56 = vld [vmem:[%s1] sm:$0xff]
  %v57 = vld [vmem:[%s1 + $0x8] sm:$0xff]
  %v58 = vld [vmem:[%s1 + $0x10] sm:$0xff]
  %v59 = vld [vmem:[%s1 + $0x18] sm:$0xff]
  %v60 = vpack.c.bf16 %v58, %v56
  %v61 = vpack.c.bf16 %v59, %v57
  %v62 = vunpack.c.l.bf16 %v60
  %v63 = vunpack.c.l.bf16 %v61
  %v64 = vunpack.c.h.bf16 %v60
  %v65 = vunpack.c.h.bf16 %v61
  %v66 = vsub.f32 %v56, %v62
  %v67 = vsub.f32 %v57, %v63
  %v68 = vsub.f32 %v58, %v64
  %v69 = vsub.f32 %v59, %v65
  %v70 = vpack.c.bf16 %v68, %v66
  %v71 = vpack.c.bf16 %v69, %v67
  %vm72 = vcmask 130048
  %v74 = vsel %vm72, %v32, 0
  %v77 = vsel %vm72, %v33, 0
  %v80 = vsel %vm72, %v34, 0
  %v83 = vsel %vm72, %v35, 0
  %85 = vmatprep.subr.bf16.mxu0 %v71
  %86 = vmatpush1.bf16.msra.mxu0 %v70
  %87 = vmatprep.subr.bf16.mxu0 0
  %88 = vmatpush1.bf16.msra.mxu0 0
  %89 = vmatprep.subr.bf16.mxu0 0
  %90 = vmatpush1.bf16.msra.mxu0 0
  %91 = vmatprep.subr.bf16.mxu0 0
  %92 = vmatpush1.bf16.msra.mxu0 0
  %93 = vmatprep.subr.bf16.mxu0 0
  %94 = vmatpush1.bf16.msra.mxu0 0
  %95 = vmatprep.subr.bf16.mxu0 0
  %96 = vmatpush1.bf16.msra.mxu0 0
  %97 = vmatprep.subr.bf16.mxu0 0
  %98 = vmatpush1.bf16.msra.mxu0 0
  %99 = vmatprep.subr.bf16.mxu0 0
  %100 = vmatpush1.bf16.msra.mxu0 0
  %101 = vmatprep.subr.bf16.mxu0 0
  %102 = vmatpush1.bf16.msra.mxu0 0
  %103 = vmatprep.subr.bf16.mxu0 0
  %104 = vmatpush1.bf16.msra.mxu0 0
  %105 = vmatprep.subr.bf16.mxu0 0
  %106 = vmatpush1.bf16.msra.mxu0 0
  %107 = vmatprep.subr.bf16.mxu0 0
  %108 = vmatpush1.bf16.msra.mxu0 0
  %109 = vmatprep.subr.bf16.mxu0 0
  %110 = vmatpush1.bf16.msra.mxu0 0
  %111 = vmatprep.subr.bf16.mxu0 0
  %112 = vmatpush1.bf16.msra.mxu0 0
  %113 = vmatprep.subr.bf16.mxu0 0
  %114 = vmatpush1.bf16.msra.mxu0 0
  %115 = vmatprep.subr.bf16.mxu0 0
  %116 = vmatpush1.bf16.msra.mxu0 0
  %117 = vmatprep.mubr.bf16.mxu0 0
  %118 = vmatmul.mubr.bf16.gmra.mrb[0].mxu0 %v74
  %v119 = vpop.f32.mrb[0].mxu0
  %v120 = vadd.f32 0.0, %v119
  %v121 = vpop.f32.mrb[0].mxu0
  %v122 = vadd.f32 0.0, %v121
  %v123 = vpop.f32.mrb[0].mxu0
  %v124 = vadd.f32 0.0, %v123
  %v125 = vpop.f32.mrb[0].mxu0
  %v126 = vadd.f32 0.0, %v125
  %127 = vmatprep.mubr.bf16.mxu0 0
  %128 = vmatmul.mubr.bf16.gmra.mrb[0].mxu0 %v77
  %v129 = vpop.f32.mrb[0].mxu0
  %v130 = vadd.f32 0.0, %v129
  %v131 = vpop.f32.mrb[0].mxu0
  %v132 = vadd.f32 0.0, %v131
  %v133 = vpop.f32.mrb[0].mxu0
  %v134 = vadd.f32 0.0, %v133
  %v135 = vpop.f32.mrb[0].mxu0
  %v136 = vadd.f32 0.0, %v135
  %137 = vmatprep.mubr.bf16.mxu0 0
  %138 = vmatmul.mubr.bf16.gmra.mrb[0].mxu0 %v80
  %v139 = vpop.f32.mrb[0].mxu0
  %v140 = vadd.f32 0.0, %v139
  %v141 = vpop.f32.mrb[0].mxu0
  %v142 = vadd.f32 0.0, %v141
  %v143 = vpop.f32.mrb[0].mxu0
  %v144 = vadd.f32 0.0, %v143
  %v145 = vpop.f32.mrb[0].mxu0
  %v146 = vadd.f32 0.0, %v145
  %147 = vmatprep.mubr.bf16.mxu0 0
  %148 = vmatmul.mubr.bf16.gmra.mrb[0].mxu0 %v83
  %v149 = vpop.f32.mrb[0].mxu0
  %v150 = vadd.f32 0.0, %v149
  %v151 = vpop.f32.mrb[0].mxu0
  %v152 = vadd.f32 0.0, %v151
  %v153 = vpop.f32.mrb[0].mxu0
  %v154 = vadd.f32 0.0, %v153
  %v155 = vpop.f32.mrb[0].mxu0
  %v156 = vadd.f32 0.0, %v155
  %157 = vdwg.mxu0
  %158 = vmatprep.subr.bf16.mxu0 %v61
  %159 = vmatpush1.bf16.msra.mxu0 %v60
  %160 = vmatprep.subr.bf16.mxu0 0
  %161 = vmatpush1.bf16.msra.mxu0 0
  %162 = vmatprep.subr.bf16.mxu0 0
  %163 = vmatpush1.bf16.msra.mxu0 0
  %164 = vmatprep.subr.bf16.mxu0 0
  %165 = vmatpush1.bf16.msra.mxu0 0
  %166 = vmatprep.subr.bf16.mxu0 0
  %167 = vmatpush1.bf16.msra.mxu0 0
  %168 = vmatprep.subr.bf16.mxu0 0
  %169 = vmatpush1.bf16.msra.mxu0 0
  %170 = vmatprep.subr.bf16.mxu0 0
  %171 = vmatpush1.bf16.msra.mxu0 0
  %172 = vmatprep.subr.bf16.mxu0 0
  %173 = vmatpush1.bf16.msra.mxu0 0
  %174 = vmatprep.subr.bf16.mxu0 0
  %175 = vmatpush1.bf16.msra.mxu0 0
  %176 = vmatprep.subr.bf16.mxu0 0
  %177 = vmatpush1.bf16.msra.mxu0 0
  %178 = vmatprep.subr.bf16.mxu0 0
  %179 = vmatpush1.bf16.msra.mxu0 0
  %180 = vmatprep.subr.bf16.mxu0 0
  %181 = vmatpush1.bf16.msra.mxu0 0
  %182 = vmatprep.subr.bf16.mxu0 0
  %183 = vmatpush1.bf16.msra.mxu0 0
  %184 = vmatprep.subr.bf16.mxu0 0
  %185 = vmatpush1.bf16.msra.mxu0 0
  %186 = vmatprep.subr.bf16.mxu0 0
  %187 = vmatpush1.bf16.msra.mxu0 0
  %188 = vmatprep.subr.bf16.mxu0 0
  %189 = vmatpush1.bf16.msra.mxu0 0
  %190 = vmatprep.mubr.bf16.mxu0 0
  %191 = vmatmul.mubr.bf16.gmra.mrb[0].mxu0 %v74
  %v192 = vpop.f32.mrb[0].mxu0
  %v193 = vadd.f32 %v120, %v192
  %v194 = vpop.f32.mrb[0].mxu0
  %v195 = vadd.f32 %v122, %v194
  %v196 = vpop.f32.mrb[0].mxu0
  %v197 = vadd.f32 %v124, %v196
  %v198 = vpop.f32.mrb[0].mxu0
  %v199 = vadd.f32 %v126, %v198
  %200 = vmatprep.mubr.bf16.mxu0 0
  %201 = vmatmul.mubr.bf16.gmra.mrb[0].mxu0 %v77
  %v202 = vpop.f32.mrb[0].mxu0
  %v203 = vadd.f32 %v130, %v202
  %v204 = vpop.f32.mrb[0].mxu0
  %v205 = vadd.f32 %v132, %v204
  %v206 = vpop.f32.mrb[0].mxu0
  %v207 = vadd.f32 %v134, %v206
  %v208 = vpop.f32.mrb[0].mxu0
  %v209 = vadd.f32 %v136, %v208
  %210 = vmatprep.mubr.bf16.mxu0 0
  %211 = vmatmul.mubr.bf16.gmra.mrb[0].mxu0 %v80
  %v212 = vpop.f32.mrb[0].mxu0
  %v213 = vadd.f32 %v140, %v212
  %v214 = vpop.f32.mrb[0].mxu0
  %v215 = vadd.f32 %v142, %v214
  %v216 = vpop.f32.mrb[0].mxu0
  %v217 = vadd.f32 %v144, %v216
  %v218 = vpop.f32.mrb[0].mxu0
  %v219 = vadd.f32 %v146, %v218
  %220 = vmatprep.mubr.bf16.mxu0 0
  %221 = vmatmul.mubr.bf16.gmra.mrb[0].mxu0 %v83
  %v222 = vpop.f32.mrb[0].mxu0
  %v223 = vadd.f32 %v150, %v222
  %v224 = vpop.f32.mrb[0].mxu0
  %v225 = vadd.f32 %v152, %v224
  %v226 = vpop.f32.mrb[0].mxu0
  %v227 = vadd.f32 %v154, %v226
  %v228 = vpop.f32.mrb[0].mxu0
  %v229 = vadd.f32 %v156, %v228
  %230 = vdwg.mxu0
  %v232 = vsel %vm72, %v52, 0
  %v235 = vsel %vm72, %v53, 0
  %v238 = vsel %vm72, %v54, 0
  %v241 = vsel %vm72, %v55, 0
  %243 = vmatprep.subr.bf16.mxu0 %v61
  %244 = vmatpush1.bf16.msra.mxu0 %v60
  %245 = vmatprep.subr.bf16.mxu0 0
  %246 = vmatpush1.bf16.msra.mxu0 0
  %247 = vmatprep.subr.bf16.mxu0 0
  %248 = vmatpush1.bf16.msra.mxu0 0
  %249 = vmatprep.subr.bf16.mxu0 0
  %250 = vmatpush1.bf16.msra.mxu0 0
  %251 = vmatprep.subr.bf16.mxu0 0
  %252 = vmatpush1.bf16.msra.mxu0 0
  %253 = vmatprep.subr.bf16.mxu0 0
  %254 = vmatpush1.bf16.msra.mxu0 0
  %255 = vmatprep.subr.bf16.mxu0 0
  %256 = vmatpush1.bf16.msra.mxu0 0
  %257 = vmatprep.subr.bf16.mxu0 0
  %258 = vmatpush1.bf16.msra.mxu0 0
  %259 = vmatprep.subr.bf16.mxu0 0
  %260 = vmatpush1.bf16.msra.mxu0 0
  %261 = vmatprep.subr.bf16.mxu0 0
  %262 = vmatpush1.bf16.msra.mxu0 0
  %263 = vmatprep.subr.bf16.mxu0 0
  %264 = vmatpush1.bf16.msra.mxu0 0
  %265 = vmatprep.subr.bf16.mxu0 0
  %266 = vmatpush1.bf16.msra.mxu0 0
  %267 = vmatprep.subr.bf16.mxu0 0
  %268 = vmatpush1.bf16.msra.mxu0 0
  %269 = vmatprep.subr.bf16.mxu0 0
  %270 = vmatpush1.bf16.msra.mxu0 0
  %271 = vmatprep.subr.bf16.mxu0 0
  %272 = vmatpush1.bf16.msra.mxu0 0
  %273 = vmatprep.subr.bf16.mxu0 0
  %274 = vmatpush1.bf16.msra.mxu0 0
  %275 = vmatprep.mubr.bf16.mxu0 0
  %276 = vmatmul.mubr.bf16.gmra.mrb[0].mxu0 %v232
  %v277 = vpop.f32.mrb[0].mxu0
  %v278 = vadd.f32 0.0, %v277
  %v279 = vpop.f32.mrb[0].mxu0
  %v280 = vadd.f32 0.0, %v279
  %v281 = vpop.f32.mrb[0].mxu0
  %v282 = vadd.f32 0.0, %v281
  %v283 = vpop.f32.mrb[0].mxu0
  %v284 = vadd.f32 0.0, %v283
  %285 = vmatprep.mubr.bf16.mxu0 0
  %286 = vmatmul.mubr.bf16.gmra.mrb[0].mxu0 %v235
  %v287 = vpop.f32.mrb[0].mxu0
  %v288 = vadd.f32 0.0, %v287
  %v289 = vpop.f32.mrb[0].mxu0
  %v290 = vadd.f32 0.0, %v289
  %v291 = vpop.f32.mrb[0].mxu0
  %v292 = vadd.f32 0.0, %v291
  %v293 = vpop.f32.mrb[0].mxu0
  %v294 = vadd.f32 0.0, %v293
  %295 = vmatprep.mubr.bf16.mxu0 0
  %296 = vmatmul.mubr.bf16.gmra.mrb[0].mxu0 %v238
  %v297 = vpop.f32.mrb[0].mxu0
  %v298 = vadd.f32 0.0, %v297
  %v299 = vpop.f32.mrb[0].mxu0
  %v300 = vadd.f32 0.0, %v299
  %v301 = vpop.f32.mrb[0].mxu0
  %v302 = vadd.f32 0.0, %v301
  %v303 = vpop.f32.mrb[0].mxu0
  %v304 = vadd.f32 0.0, %v303
  %305 = vmatprep.mubr.bf16.mxu0 0
  %306 = vmatmul.mubr.bf16.gmra.mrb[0].mxu0 %v241
  %v307 = vpop.f32.mrb[0].mxu0
  %v308 = vadd.f32 0.0, %v307
  %v309 = vpop.f32.mrb[0].mxu0
  %v310 = vadd.f32 0.0, %v309
  %v311 = vpop.f32.mrb[0].mxu0
  %v312 = vadd.f32 0.0, %v311
  %v313 = vpop.f32.mrb[0].mxu0
  %v314 = vadd.f32 0.0, %v313
  %315 = vdwg.mxu0
  %v316 = vadd.f32 %v193, %v278
  %v317 = vadd.f32 %v195, %v280
  %v318 = vadd.f32 %v197, %v282
  %v319 = vadd.f32 %v199, %v284
  %v320 = vadd.f32 %v203, %v288
  %v321 = vadd.f32 %v205, %v290
  %v322 = vadd.f32 %v207, %v292
  %v323 = vadd.f32 %v209, %v294
  %v324 = vadd.f32 %v213, %v298
  %v325 = vadd.f32 %v215, %v300
  %v326 = vadd.f32 %v217, %v302
  %v327 = vadd.f32 %v219, %v304
  %v328 = vadd.f32 %v223, %v308
  %v329 = vadd.f32 %v225, %v310
  %v330 = vadd.f32 %v227, %v312
  %v331 = vadd.f32 %v229, %v314
  %v332 = vld [vmem:[%s3] sm:$0x3]
  %v334 = vlaneseq
  %v335 = vshrl.u32 %v334, 7
  %v336 = vsub.s32 0, %v335
  %v337 = vrot.slane %v332, %v336
  %v338 = vlaneseq
  %v339 = vshrl.u32 %v338, 7
  %v340 = vsub.s32 1, %v339
  %v341 = vrot.slane %v332, %v340
  %v344 = vadd.f32 %v316, %v337
  %v345 = vadd.f32 %v317, %v341
  %v346 = vadd.f32 %v318, %v337
  %v347 = vadd.f32 %v319, %v341
  %v348 = vadd.f32 %v320, %v337
  %v349 = vadd.f32 %v321, %v341
  %v350 = vadd.f32 %v322, %v337
  %v351 = vadd.f32 %v323, %v341
  %v352 = vadd.f32 %v324, %v337
  %v353 = vadd.f32 %v325, %v341
  %v354 = vadd.f32 %v326, %v337
  %v355 = vadd.f32 %v327, %v341
  %v356 = vadd.f32 %v328, %v337
  %v357 = vadd.f32 %v329, %v341
  %v358 = vadd.f32 %v330, %v337
  %v359 = vadd.f32 %v331, %v341
  %v360 = vld [vmem:[%s2] sm:$0xff]
  %v361 = vld [vmem:[%s2 + $0x8] sm:$0xff]
  %v362 = vld [vmem:[%s2 + $0x10] sm:$0xff]
  %v363 = vld [vmem:[%s2 + $0x18] sm:$0xff]
  %v364 = vld [vmem:[%s2 + $0x20] sm:$0xff]
  %v365 = vld [vmem:[%s2 + $0x28] sm:$0xff]
  %v366 = vld [vmem:[%s2 + $0x30] sm:$0xff]
  %v367 = vld [vmem:[%s2 + $0x38] sm:$0xff]
  %v368 = vpack.c.bf16 %v361, %v360
  %v369 = vpack.c.bf16 %v363, %v362
  %v370 = vpack.c.bf16 %v365, %v364
  %v371 = vpack.c.bf16 %v367, %v366
  %v372 = vunpack.c.l.bf16 %v368
  %v373 = vunpack.c.h.bf16 %v368
  %v374 = vunpack.c.l.bf16 %v369
  %v375 = vunpack.c.h.bf16 %v369
  %v376 = vunpack.c.l.bf16 %v370
  %v377 = vunpack.c.h.bf16 %v370
  %v378 = vunpack.c.l.bf16 %v371
  %v379 = vunpack.c.h.bf16 %v371
  %v380 = vsub.f32 %v360, %v372
  %v381 = vsub.f32 %v361, %v373
  %v382 = vsub.f32 %v362, %v374
  %v383 = vsub.f32 %v363, %v375
  %v384 = vsub.f32 %v364, %v376
  %v385 = vsub.f32 %v365, %v377
  %v386 = vsub.f32 %v366, %v378
  %v387 = vsub.f32 %v367, %v379
  %v388 = vpack.c.bf16 %v381, %v380
  %v389 = vpack.c.bf16 %v383, %v382
  %v390 = vpack.c.bf16 %v385, %v384
  %v391 = vpack.c.bf16 %v387, %v386
  %v392 = vlaneseq
  %v393 = vshrl.u32 %v392, 7
  %v394 = vadd.s32 %v393, 8
  %v395 = vlaneseq
  %v396 = vand.u32 %v395, 127
  %vm397 = vcmp.lt.s32.totalorder %v393, 8
  %vm398 = vcmp.lt.s32.totalorder %v394, 8
  %vm399 = vcmp.lt.s32.totalorder %v396, 32
  %vm400 = vmxor %vm397, %vm399
  %vm401 = vmxor %vm398, %vm399
  %vm402 = vmxor %vm400, 1
  %vm403 = vmxor %vm401, 1
  %v404 = vsel %vm402, 1, 0
  %v405 = vsel %vm403, 1, 0
  %v406 = vcvt.s32.f32 %v404
  %v407 = vcvt.s32.f32 %v405
  %v408 = vxor.u32 %v344, 2147483648
  %v409 = vxor.u32 %v359, 2147483648
  %v410 = vmul.f32 %v408, 1.442695
  %v411 = vpow.pop %v410
  %v412 = vmul.f32 %v409, 1.442695
  %v413 = vpow.pop %v412
  %v414 = vadd.f32 %v411, 1.0
  %v415 = vadd.f32 %v413, 1.0
  %v416 = vrcp.pop %v414
  %v417 = vmul.f32 1.0, %v416
  %v418 = vrcp.pop %v415
  %v419 = vmul.f32 1.0, %v418
  %v420 = vtanh.pop %v344
  %v421 = vtanh.pop %v359
  %v422 = vmul.f32 %v417, 0.0
  %v423 = vmul.f32 %v419, 0.0
  %426 = vrot.lane.b32.xlu0 %v420, 32
  %v427 = vpop.permute.xlu0 %426
  %428 = vrot.lane.b32.xlu0 %v421, 32
  %v429 = vpop.permute.xlu0 %428
  %v432 = vmul.f32 %v417, %v427
  %v433 = vmul.f32 %v419, %v429
  %436 = vrot.lane.b32.xlu0 %v432, 32
  %v437 = vpop.permute.xlu0 %436
  %438 = vrot.lane.b32.xlu0 %v433, 32
  %v439 = vpop.permute.xlu0 %438
  %v442 = vadd.f32 %v422, %v437
  %v443 = vadd.f32 %v423, %v439
  %v444 = vtanh.pop %v442
  %v445 = vtanh.pop %v443
  %448 = vrot.lane.b32.xlu0 %v444, 32
  %v449 = vpop.permute.xlu0 %448
  %450 = vrot.lane.b32.xlu0 %v445, 32
  %v451 = vpop.permute.xlu0 %450
  %v454 = vmul.f32 %v417, %v449
  %v455 = vmul.f32 %v419, %v451
  %458 = vrot.lane.b32.xlu0 %v454, 64
  %v459 = vpop.permute.xlu0 %458
  %460 = vrot.lane.b32.xlu0 %v455, 64
  %v461 = vpop.permute.xlu0 %460
  %464 = vrot.lane.b32.xlu0 %v454, 96
  %v465 = vpop.permute.xlu0 %464
  %466 = vrot.lane.b32.xlu0 %v455, 96
  %v467 = vpop.permute.xlu0 %466
  %vm470 = vcmask 261120
  %v471 = vsel %vm470, %v459, %v465
  %v472 = vsel %vm470, %v461, %v467
  %v473 = vmul.f32 %v471, %v406
  %v474 = vmul.f32 %v472, %v407
  %v475 = vpack.c.bf16 %v474, %v473
  %v476 = vunpack.c.l.bf16 %v475
  %v477 = vunpack.c.h.bf16 %v475
  %v478 = vsub.f32 %v473, %v476
  %v479 = vsub.f32 %v474, %v477
  %v480 = vpack.c.bf16 %v479, %v478
  %vm481 = vcmask 523264
  %v483 = vsel %vm481, %v475, 0
  %485 = vmatprep.subr.bf16.mxu0 0
  %486 = vmatpush1.bf16.msra.mxu0 %v388
  %487 = vmatprep.subr.bf16.mxu0 0
  %488 = vmatpush1.bf16.msra.mxu0 %v389
  %489 = vmatprep.subr.bf16.mxu0 0
  %490 = vmatpush1.bf16.msra.mxu0 %v390
  %491 = vmatprep.subr.bf16.mxu0 0
  %492 = vmatpush1.bf16.msra.mxu0 %v391
  %493 = vmatprep.subr.bf16.mxu0 0
  %494 = vmatpush1.bf16.msra.mxu0 0
  %495 = vmatprep.subr.bf16.mxu0 0
  %496 = vmatpush1.bf16.msra.mxu0 0
  %497 = vmatprep.subr.bf16.mxu0 0
  %498 = vmatpush1.bf16.msra.mxu0 0
  %499 = vmatprep.subr.bf16.mxu0 0
  %500 = vmatpush1.bf16.msra.mxu0 0
  %501 = vmatprep.subr.bf16.mxu0 0
  %502 = vmatpush1.bf16.msra.mxu0 0
  %503 = vmatprep.subr.bf16.mxu0 0
  %504 = vmatpush1.bf16.msra.mxu0 0
  %505 = vmatprep.subr.bf16.mxu0 0
  %506 = vmatpush1.bf16.msra.mxu0 0
  %507 = vmatprep.subr.bf16.mxu0 0
  %508 = vmatpush1.bf16.msra.mxu0 0
  %509 = vmatprep.subr.bf16.mxu0 0
  %510 = vmatpush1.bf16.msra.mxu0 0
  %511 = vmatprep.subr.bf16.mxu0 0
  %512 = vmatpush1.bf16.msra.mxu0 0
  %513 = vmatprep.subr.bf16.mxu0 0
  %514 = vmatpush1.bf16.msra.mxu0 0
  %515 = vmatprep.subr.bf16.mxu0 0
  %516 = vmatpush1.bf16.msra.mxu0 0
  %517 = vmatprep.mubr.bf16.mxu0 0
  %518 = vmatmul.mubr.bf16.gmra.mrb[0].mxu0 %v483
  %v519 = vpop.f32.mrb[0].mxu0
  %v520 = vadd.f32 0.0, %v519
  %v521 = vpop.f32.mrb[0].mxu0
  %v522 = vpop.f32.mrb[0].mxu0
  %v523 = vadd.f32 0.0, %v522
  %v524 = vpop.f32.mrb[0].mxu0
  %525 = vdwg.mxu0
  %526 = vmatprep.subr.bf16.mxu0 0
  %527 = vmatpush1.bf16.msra.mxu0 %v368
  %528 = vmatprep.subr.bf16.mxu0 0
  %529 = vmatpush1.bf16.msra.mxu0 %v369
  %530 = vmatprep.subr.bf16.mxu0 0
  %531 = vmatpush1.bf16.msra.mxu0 %v370
  %532 = vmatprep.subr.bf16.mxu0 0
  %533 = vmatpush1.bf16.msra.mxu0 %v371
  %534 = vmatprep.subr.bf16.mxu0 0
  %535 = vmatpush1.bf16.msra.mxu0 0
  %536 = vmatprep.subr.bf16.mxu0 0
  %537 = vmatpush1.bf16.msra.mxu0 0
  %538 = vmatprep.subr.bf16.mxu0 0
  %539 = vmatpush1.bf16.msra.mxu0 0
  %540 = vmatprep.subr.bf16.mxu0 0
  %541 = vmatpush1.bf16.msra.mxu0 0
  %542 = vmatprep.subr.bf16.mxu0 0
  %543 = vmatpush1.bf16.msra.mxu0 0
  %544 = vmatprep.subr.bf16.mxu0 0
  %545 = vmatpush1.bf16.msra.mxu0 0
  %546 = vmatprep.subr.bf16.mxu0 0
  %547 = vmatpush1.bf16.msra.mxu0 0
  %548 = vmatprep.subr.bf16.mxu0 0
  %549 = vmatpush1.bf16.msra.mxu0 0
  %550 = vmatprep.subr.bf16.mxu0 0
  %551 = vmatpush1.bf16.msra.mxu0 0
  %552 = vmatprep.subr.bf16.mxu0 0
  %553 = vmatpush1.bf16.msra.mxu0 0
  %554 = vmatprep.subr.bf16.mxu0 0
  %555 = vmatpush1.bf16.msra.mxu0 0
  %556 = vmatprep.subr.bf16.mxu0 0
  %557 = vmatpush1.bf16.msra.mxu0 0
  %558 = vmatprep.mubr.bf16.mxu0 0
  %559 = vmatmul.mubr.bf16.gmra.mrb[0].mxu0 %v483
  %v560 = vpop.f32.mrb[0].mxu0
  %v561 = vadd.f32 %v520, %v560
  %v562 = vpop.f32.mrb[0].mxu0
  %v563 = vpop.f32.mrb[0].mxu0
  %v564 = vadd.f32 %v523, %v563
  %v565 = vpop.f32.mrb[0].mxu0
  %566 = vdwg.mxu0
  %v568 = vsel %vm481, %v480, 0
  %570 = vmatprep.subr.bf16.mxu0 0
  %571 = vmatpush1.bf16.msra.mxu0 %v368
  %572 = vmatprep.subr.bf16.mxu0 0
  %573 = vmatpush1.bf16.msra.mxu0 %v369
  %574 = vmatprep.subr.bf16.mxu0 0
  %575 = vmatpush1.bf16.msra.mxu0 %v370
  %576 = vmatprep.subr.bf16.mxu0 0
  %577 = vmatpush1.bf16.msra.mxu0 %v371
  %578 = vmatprep.subr.bf16.mxu0 0
  %579 = vmatpush1.bf16.msra.mxu0 0
  %580 = vmatprep.subr.bf16.mxu0 0
  %581 = vmatpush1.bf16.msra.mxu0 0
  %582 = vmatprep.subr.bf16.mxu0 0
  %583 = vmatpush1.bf16.msra.mxu0 0
  %584 = vmatprep.subr.bf16.mxu0 0
  %585 = vmatpush1.bf16.msra.mxu0 0
  %586 = vmatprep.subr.bf16.mxu0 0
  %587 = vmatpush1.bf16.msra.mxu0 0
  %588 = vmatprep.subr.bf16.mxu0 0
  %589 = vmatpush1.bf16.msra.mxu0 0
  %590 = vmatprep.subr.bf16.mxu0 0
  %591 = vmatpush1.bf16.msra.mxu0 0
  %592 = vmatprep.subr.bf16.mxu0 0
  %593 = vmatpush1.bf16.msra.mxu0 0
  %594 = vmatprep.subr.bf16.mxu0 0
  %595 = vmatpush1.bf16.msra.mxu0 0
  %596 = vmatprep.subr.bf16.mxu0 0
  %597 = vmatpush1.bf16.msra.mxu0 0
  %598 = vmatprep.subr.bf16.mxu0 0
  %599 = vmatpush1.bf16.msra.mxu0 0
  %600 = vmatprep.subr.bf16.mxu0 0
  %601 = vmatpush1.bf16.msra.mxu0 0
  %602 = vmatprep.mubr.bf16.mxu0 0
  %603 = vmatmul.mubr.bf16.gmra.mrb[0].mxu0 %v568
  %v604 = vpop.f32.mrb[0].mxu0
  %v605 = vadd.f32 0.0, %v604
  %v606 = vpop.f32.mrb[0].mxu0
  %v607 = vpop.f32.mrb[0].mxu0
  %v608 = vadd.f32 0.0, %v607
  %v609 = vpop.f32.mrb[0].mxu0
  %610 = vdwg.mxu0
  %v611 = vadd.f32 %v561, %v605
  %v612 = vadd.f32 %v564, %v608
  %v613 = vadd.f32 %v346, %v611
  %v614 = vadd.f32 %v357, %v612
  %v615 = vxor.u32 %v613, 2147483648
  %v616 = vxor.u32 %v614, 2147483648
  %v617 = vmul.f32 %v615, 1.442695
  %v618 = vpow.pop %v617
  %v619 = vmul.f32 %v616, 1.442695
  %v620 = vpow.pop %v619
  %v621 = vadd.f32 %v618, 1.0
  %v622 = vadd.f32 %v620, 1.0
  %v623 = vrcp.pop %v621
  %v624 = vmul.f32 1.0, %v623
  %v625 = vrcp.pop %v622
  %v626 = vmul.f32 1.0, %v625
  %v627 = vtanh.pop %v613
  %v628 = vtanh.pop %v614
  %v629 = vmul.f32 %v624, %v442
  %v630 = vmul.f32 %v626, %v443
  %633 = vrot.lane.b32.xlu0 %v627, 32
  %v634 = vpop.permute.xlu0 %633
  %635 = vrot.lane.b32.xlu0 %v628, 32
  %v636 = vpop.permute.xlu0 %635
  %v639 = vmul.f32 %v624, %v634
  %v640 = vmul.f32 %v626, %v636
  %643 = vrot.lane.b32.xlu0 %v639, 32
  %v644 = vpop.permute.xlu0 %643
  %645 = vrot.lane.b32.xlu0 %v640, 32
  %v646 = vpop.permute.xlu0 %645
  %v649 = vadd.f32 %v629, %v644
  %v650 = vadd.f32 %v630, %v646
  %v651 = vtanh.pop %v649
  %v652 = vtanh.pop %v650
  %655 = vrot.lane.b32.xlu0 %v651, 32
  %v656 = vpop.permute.xlu0 %655
  %657 = vrot.lane.b32.xlu0 %v652, 32
  %v658 = vpop.permute.xlu0 %657
  %v661 = vmul.f32 %v624, %v656
  %v662 = vmul.f32 %v626, %v658
  %665 = vrot.lane.b32.xlu0 %v661, 64
  %v666 = vpop.permute.xlu0 %665
  %667 = vrot.lane.b32.xlu0 %v662, 64
  %v668 = vpop.permute.xlu0 %667
  %671 = vrot.lane.b32.xlu0 %v661, 96
  %v672 = vpop.permute.xlu0 %671
  %673 = vrot.lane.b32.xlu0 %v662, 96
  %v674 = vpop.permute.xlu0 %673
  %v677 = vsel %vm470, %v666, %v672
  %v678 = vsel %vm470, %v668, %v674
  %v679 = vmul.f32 %v677, %v406
  %v680 = vmul.f32 %v678, %v407
  %v681 = vpack.c.bf16 %v680, %v679
  %v682 = vunpack.c.l.bf16 %v681
  %v683 = vunpack.c.h.bf16 %v681
  %v684 = vsub.f32 %v679, %v682
  %v685 = vsub.f32 %v680, %v683
  %v686 = vpack.c.bf16 %v685, %v684
  %v688 = vsel %vm481, %v681, 0
  %690 = vmatprep.subr.bf16.mxu0 0
  %691 = vmatpush1.bf16.msra.mxu0 %v388
  %692 = vmatprep.subr.bf16.mxu0 0
  %693 = vmatpush1.bf16.msra.mxu0 %v389
  %694 = vmatprep.subr.bf16.mxu0 0
  %695 = vmatpush1.bf16.msra.mxu0 %v390
  %696 = vmatprep.subr.bf16.mxu0 0
  %697 = vmatpush1.bf16.msra.mxu0 %v391
  %698 = vmatprep.subr.bf16.mxu0 0
  %699 = vmatpush1.bf16.msra.mxu0 0
  %700 = vmatprep.subr.bf16.mxu0 0
  %701 = vmatpush1.bf16.msra.mxu0 0
  %702 = vmatprep.subr.bf16.mxu0 0
  %703 = vmatpush1.bf16.msra.mxu0 0
  %704 = vmatprep.subr.bf16.mxu0 0
  %705 = vmatpush1.bf16.msra.mxu0 0
  %706 = vmatprep.subr.bf16.mxu0 0
  %707 = vmatpush1.bf16.msra.mxu0 0
  %708 = vmatprep.subr.bf16.mxu0 0
  %709 = vmatpush1.bf16.msra.mxu0 0
  %710 = vmatprep.subr.bf16.mxu0 0
  %711 = vmatpush1.bf16.msra.mxu0 0
  %712 = vmatprep.subr.bf16.mxu0 0
  %713 = vmatpush1.bf16.msra.mxu0 0
  %714 = vmatprep.subr.bf16.mxu0 0
  %715 = vmatpush1.bf16.msra.mxu0 0
  %716 = vmatprep.subr.bf16.mxu0 0
  %717 = vmatpush1.bf16.msra.mxu0 0
  %718 = vmatprep.subr.bf16.mxu0 0
  %719 = vmatpush1.bf16.msra.mxu0 0
  %720 = vmatprep.subr.bf16.mxu0 0
  %721 = vmatpush1.bf16.msra.mxu0 0
  %722 = vmatprep.mubr.bf16.mxu0 0
  %723 = vmatmul.mubr.bf16.gmra.mrb[0].mxu0 %v688
  %v724 = vpop.f32.mrb[0].mxu0
  %v725 = vadd.f32 0.0, %v724
  %v726 = vpop.f32.mrb[0].mxu0
  %v727 = vpop.f32.mrb[0].mxu0
  %v728 = vadd.f32 0.0, %v727
  %v729 = vpop.f32.mrb[0].mxu0
  %730 = vdwg.mxu0
  %731 = vmatprep.subr.bf16.mxu0 0
  %732 = vmatpush1.bf16.msra.mxu0 %v368
  %733 = vmatprep.subr.bf16.mxu0 0
  %734 = vmatpush1.bf16.msra.mxu0 %v369
  %735 = vmatprep.subr.bf16.mxu0 0
  %736 = vmatpush1.bf16.msra.mxu0 %v370
  %737 = vmatprep.subr.bf16.mxu0 0
  %738 = vmatpush1.bf16.msra.mxu0 %v371
  %739 = vmatprep.subr.bf16.mxu0 0
  %740 = vmatpush1.bf16.msra.mxu0 0
  %741 = vmatprep.subr.bf16.mxu0 0
  %742 = vmatpush1.bf16.msra.mxu0 0
  %743 = vmatprep.subr.bf16.mxu0 0
  %744 = vmatpush1.bf16.msra.mxu0 0
  %745 = vmatprep.subr.bf16.mxu0 0
  %746 = vmatpush1.bf16.msra.mxu0 0
  %747 = vmatprep.subr.bf16.mxu0 0
  %748 = vmatpush1.bf16.msra.mxu0 0
  %749 = vmatprep.subr.bf16.mxu0 0
  %750 = vmatpush1.bf16.msra.mxu0 0
  %751 = vmatprep.subr.bf16.mxu0 0
  %752 = vmatpush1.bf16.msra.mxu0 0
  %753 = vmatprep.subr.bf16.mxu0 0
  %754 = vmatpush1.bf16.msra.mxu0 0
  %755 = vmatprep.subr.bf16.mxu0 0
  %756 = vmatpush1.bf16.msra.mxu0 0
  %757 = vmatprep.subr.bf16.mxu0 0
  %758 = vmatpush1.bf16.msra.mxu0 0
  %759 = vmatprep.subr.bf16.mxu0 0
  %760 = vmatpush1.bf16.msra.mxu0 0
  %761 = vmatprep.subr.bf16.mxu0 0
  %762 = vmatpush1.bf16.msra.mxu0 0
  %763 = vmatprep.mubr.bf16.mxu0 0
  %764 = vmatmul.mubr.bf16.gmra.mrb[0].mxu0 %v688
  %v765 = vpop.f32.mrb[0].mxu0
  %v766 = vadd.f32 %v725, %v765
  %v767 = vpop.f32.mrb[0].mxu0
  %v768 = vpop.f32.mrb[0].mxu0
  %v769 = vadd.f32 %v728, %v768
  %v770 = vpop.f32.mrb[0].mxu0
  %771 = vdwg.mxu0
  %v773 = vsel %vm481, %v686, 0
  %775 = vmatprep.subr.bf16.mxu0 0
  %776 = vmatpush1.bf16.msra.mxu0 %v368
  %777 = vmatprep.subr.bf16.mxu0 0
  %778 = vmatpush1.bf16.msra.mxu0 %v369
  %779 = vmatprep.subr.bf16.mxu0 0
  %780 = vmatpush1.bf16.msra.mxu0 %v370
  %781 = vmatprep.subr.bf16.mxu0 0
  %782 = vmatpush1.bf16.msra.mxu0 %v371
  %783 = vmatprep.subr.bf16.mxu0 0
  %784 = vmatpush1.bf16.msra.mxu0 0
  %785 = vmatprep.subr.bf16.mxu0 0
  %786 = vmatpush1.bf16.msra.mxu0 0
  %787 = vmatprep.subr.bf16.mxu0 0
  %788 = vmatpush1.bf16.msra.mxu0 0
  %789 = vmatprep.subr.bf16.mxu0 0
  %790 = vmatpush1.bf16.msra.mxu0 0
  %791 = vmatprep.subr.bf16.mxu0 0
  %792 = vmatpush1.bf16.msra.mxu0 0
  %793 = vmatprep.subr.bf16.mxu0 0
  %794 = vmatpush1.bf16.msra.mxu0 0
  %795 = vmatprep.subr.bf16.mxu0 0
  %796 = vmatpush1.bf16.msra.mxu0 0
  %797 = vmatprep.subr.bf16.mxu0 0
  %798 = vmatpush1.bf16.msra.mxu0 0
  %799 = vmatprep.subr.bf16.mxu0 0
  %800 = vmatpush1.bf16.msra.mxu0 0
  %801 = vmatprep.subr.bf16.mxu0 0
  %802 = vmatpush1.bf16.msra.mxu0 0
  %803 = vmatprep.subr.bf16.mxu0 0
  %804 = vmatpush1.bf16.msra.mxu0 0
  %805 = vmatprep.subr.bf16.mxu0 0
  %806 = vmatpush1.bf16.msra.mxu0 0
  %807 = vmatprep.mubr.bf16.mxu0 0
  %808 = vmatmul.mubr.bf16.gmra.mrb[0].mxu0 %v773
  %v809 = vpop.f32.mrb[0].mxu0
  %v810 = vadd.f32 0.0, %v809
  %v811 = vpop.f32.mrb[0].mxu0
  %v812 = vpop.f32.mrb[0].mxu0
  %v813 = vadd.f32 0.0, %v812
  %v814 = vpop.f32.mrb[0].mxu0
  %815 = vdwg.mxu0
  %v816 = vadd.f32 %v766, %v810
  %v817 = vadd.f32 %v769, %v813
  %v818 = vadd.f32 %v348, %v816
  %v819 = vadd.f32 %v355, %v817
  %v820 = vxor.u32 %v818, 2147483648
  %v821 = vxor.u32 %v819, 2147483648
  %v822 = vmul.f32 %v820, 1.442695
  %v823 = vpow.pop %v822
  %v824 = vmul.f32 %v821, 1.442695
  %v825 = vpow.pop %v824
  %v826 = vadd.f32 %v823, 1.0
  %v827 = vadd.f32 %v825, 1.0
  %v828 = vrcp.pop %v826
  %v829 = vmul.f32 1.0, %v828
  %v830 = vrcp.pop %v827
  %v831 = vmul.f32 1.0, %v830
  %v832 = vtanh.pop %v818
  %v833 = vtanh.pop %v819
  %v834 = vmul.f32 %v829, %v649
  %v835 = vmul.f32 %v831, %v650
  %838 = vrot.lane.b32.xlu0 %v832, 32
  %v839 = vpop.permute.xlu0 %838
  %840 = vrot.lane.b32.xlu0 %v833, 32
  %v841 = vpop.permute.xlu0 %840
  %v844 = vmul.f32 %v829, %v839
  %v845 = vmul.f32 %v831, %v841
  %848 = vrot.lane.b32.xlu0 %v844, 32
  %v849 = vpop.permute.xlu0 %848
  %850 = vrot.lane.b32.xlu0 %v845, 32
  %v851 = vpop.permute.xlu0 %850
  %v854 = vadd.f32 %v834, %v849
  %v855 = vadd.f32 %v835, %v851
  %v856 = vtanh.pop %v854
  %v857 = vtanh.pop %v855
  %860 = vrot.lane.b32.xlu0 %v856, 32
  %v861 = vpop.permute.xlu0 %860
  %862 = vrot.lane.b32.xlu0 %v857, 32
  %v863 = vpop.permute.xlu0 %862
  %v866 = vmul.f32 %v829, %v861
  %v867 = vmul.f32 %v831, %v863
  %870 = vrot.lane.b32.xlu0 %v866, 64
  %v871 = vpop.permute.xlu0 %870
  %872 = vrot.lane.b32.xlu0 %v867, 64
  %v873 = vpop.permute.xlu0 %872
  %876 = vrot.lane.b32.xlu0 %v866, 96
  %v877 = vpop.permute.xlu0 %876
  %878 = vrot.lane.b32.xlu0 %v867, 96
  %v879 = vpop.permute.xlu0 %878
  %v882 = vsel %vm470, %v871, %v877
  %v883 = vsel %vm470, %v873, %v879
  %v884 = vmul.f32 %v882, %v406
  %v885 = vmul.f32 %v883, %v407
  %v886 = vpack.c.bf16 %v885, %v884
  %v887 = vunpack.c.l.bf16 %v886
  %v888 = vunpack.c.h.bf16 %v886
  %v889 = vsub.f32 %v884, %v887
  %v890 = vsub.f32 %v885, %v888
  %v891 = vpack.c.bf16 %v890, %v889
  %v893 = vsel %vm481, %v886, 0
  %895 = vmatprep.subr.bf16.mxu0 0
  %896 = vmatpush1.bf16.msra.mxu0 %v388
  %897 = vmatprep.subr.bf16.mxu0 0
  %898 = vmatpush1.bf16.msra.mxu0 %v389
  %899 = vmatprep.subr.bf16.mxu0 0
  %900 = vmatpush1.bf16.msra.mxu0 %v390
  %901 = vmatprep.subr.bf16.mxu0 0
  %902 = vmatpush1.bf16.msra.mxu0 %v391
  %903 = vmatprep.subr.bf16.mxu0 0
  %904 = vmatpush1.bf16.msra.mxu0 0
  %905 = vmatprep.subr.bf16.mxu0 0
  %906 = vmatpush1.bf16.msra.mxu0 0
  %907 = vmatprep.subr.bf16.mxu0 0
  %908 = vmatpush1.bf16.msra.mxu0 0
  %909 = vmatprep.subr.bf16.mxu0 0
  %910 = vmatpush1.bf16.msra.mxu0 0
  %911 = vmatprep.subr.bf16.mxu0 0
  %912 = vmatpush1.bf16.msra.mxu0 0
  %913 = vmatprep.subr.bf16.mxu0 0
  %914 = vmatpush1.bf16.msra.mxu0 0
  %915 = vmatprep.subr.bf16.mxu0 0
  %916 = vmatpush1.bf16.msra.mxu0 0
  %917 = vmatprep.subr.bf16.mxu0 0
  %918 = vmatpush1.bf16.msra.mxu0 0
  %919 = vmatprep.subr.bf16.mxu0 0
  %920 = vmatpush1.bf16.msra.mxu0 0
  %921 = vmatprep.subr.bf16.mxu0 0
  %922 = vmatpush1.bf16.msra.mxu0 0
  %923 = vmatprep.subr.bf16.mxu0 0
  %924 = vmatpush1.bf16.msra.mxu0 0
  %925 = vmatprep.subr.bf16.mxu0 0
  %926 = vmatpush1.bf16.msra.mxu0 0
  %927 = vmatprep.mubr.bf16.mxu0 0
  %928 = vmatmul.mubr.bf16.gmra.mrb[0].mxu0 %v893
  %v929 = vpop.f32.mrb[0].mxu0
  %v930 = vadd.f32 0.0, %v929
  %v931 = vpop.f32.mrb[0].mxu0
  %v932 = vpop.f32.mrb[0].mxu0
  %v933 = vadd.f32 0.0, %v932
  %v934 = vpop.f32.mrb[0].mxu0
  %935 = vdwg.mxu0
  %936 = vmatprep.subr.bf16.mxu0 0
  %937 = vmatpush1.bf16.msra.mxu0 %v368
  %938 = vmatprep.subr.bf16.mxu0 0
  %939 = vmatpush1.bf16.msra.mxu0 %v369
  %940 = vmatprep.subr.bf16.mxu0 0
  %941 = vmatpush1.bf16.msra.mxu0 %v370
  %942 = vmatprep.subr.bf16.mxu0 0
  %943 = vmatpush1.bf16.msra.mxu0 %v371
  %944 = vmatprep.subr.bf16.mxu0 0
  %945 = vmatpush1.bf16.msra.mxu0 0
  %946 = vmatprep.subr.bf16.mxu0 0
  %947 = vmatpush1.bf16.msra.mxu0 0
  %948 = vmatprep.subr.bf16.mxu0 0
  %949 = vmatpush1.bf16.msra.mxu0 0
  %950 = vmatprep.subr.bf16.mxu0 0
  %951 = vmatpush1.bf16.msra.mxu0 0
  %952 = vmatprep.subr.bf16.mxu0 0
  %953 = vmatpush1.bf16.msra.mxu0 0
  %954 = vmatprep.subr.bf16.mxu0 0
  %955 = vmatpush1.bf16.msra.mxu0 0
  %956 = vmatprep.subr.bf16.mxu0 0
  %957 = vmatpush1.bf16.msra.mxu0 0
  %958 = vmatprep.subr.bf16.mxu0 0
  %959 = vmatpush1.bf16.msra.mxu0 0
  %960 = vmatprep.subr.bf16.mxu0 0
  %961 = vmatpush1.bf16.msra.mxu0 0
  %962 = vmatprep.subr.bf16.mxu0 0
  %963 = vmatpush1.bf16.msra.mxu0 0
  %964 = vmatprep.subr.bf16.mxu0 0
  %965 = vmatpush1.bf16.msra.mxu0 0
  %966 = vmatprep.subr.bf16.mxu0 0
  %967 = vmatpush1.bf16.msra.mxu0 0
  %968 = vmatprep.mubr.bf16.mxu0 0
  %969 = vmatmul.mubr.bf16.gmra.mrb[0].mxu0 %v893
  %v970 = vpop.f32.mrb[0].mxu0
  %v971 = vadd.f32 %v930, %v970
  %v972 = vpop.f32.mrb[0].mxu0
  %v973 = vpop.f32.mrb[0].mxu0
  %v974 = vadd.f32 %v933, %v973
  %v975 = vpop.f32.mrb[0].mxu0
  %976 = vdwg.mxu0
  %v978 = vsel %vm481, %v891, 0
  %980 = vmatprep.subr.bf16.mxu0 0
  %981 = vmatpush1.bf16.msra.mxu0 %v368
  %982 = vmatprep.subr.bf16.mxu0 0
  %983 = vmatpush1.bf16.msra.mxu0 %v369
  %984 = vmatprep.subr.bf16.mxu0 0
  %985 = vmatpush1.bf16.msra.mxu0 %v370
  %986 = vmatprep.subr.bf16.mxu0 0
  %987 = vmatpush1.bf16.msra.mxu0 %v371
  %988 = vmatprep.subr.bf16.mxu0 0
  %989 = vmatpush1.bf16.msra.mxu0 0
  %990 = vmatprep.subr.bf16.mxu0 0
  %991 = vmatpush1.bf16.msra.mxu0 0
  %992 = vmatprep.subr.bf16.mxu0 0
  %993 = vmatpush1.bf16.msra.mxu0 0
  %994 = vmatprep.subr.bf16.mxu0 0
  %995 = vmatpush1.bf16.msra.mxu0 0
  %996 = vmatprep.subr.bf16.mxu0 0
  %997 = vmatpush1.bf16.msra.mxu0 0
  %998 = vmatprep.subr.bf16.mxu0 0
  %999 = vmatpush1.bf16.msra.mxu0 0
  %1000 = vmatprep.subr.bf16.mxu0 0
  %1001 = vmatpush1.bf16.msra.mxu0 0
  %1002 = vmatprep.subr.bf16.mxu0 0
  %1003 = vmatpush1.bf16.msra.mxu0 0
  %1004 = vmatprep.subr.bf16.mxu0 0
  %1005 = vmatpush1.bf16.msra.mxu0 0
  %1006 = vmatprep.subr.bf16.mxu0 0
  %1007 = vmatpush1.bf16.msra.mxu0 0
  %1008 = vmatprep.subr.bf16.mxu0 0
  %1009 = vmatpush1.bf16.msra.mxu0 0
  %1010 = vmatprep.subr.bf16.mxu0 0
  %1011 = vmatpush1.bf16.msra.mxu0 0
  %1012 = vmatprep.mubr.bf16.mxu0 0
  %1013 = vmatmul.mubr.bf16.gmra.mrb[0].mxu0 %v978
  %v1014 = vpop.f32.mrb[0].mxu0
  %v1015 = vadd.f32 0.0, %v1014
  %v1016 = vpop.f32.mrb[0].mxu0
  %v1017 = vpop.f32.mrb[0].mxu0
  %v1018 = vadd.f32 0.0, %v1017
  %v1019 = vpop.f32.mrb[0].mxu0
  %1020 = vdwg.mxu0
  %v1021 = vadd.f32 %v971, %v1015
  %v1022 = vadd.f32 %v974, %v1018
  %v1023 = vadd.f32 %v350, %v1021
  %v1024 = vadd.f32 %v353, %v1022
  %v1025 = vxor.u32 %v1023, 2147483648
  %v1026 = vxor.u32 %v1024, 2147483648
  %v1027 = vmul.f32 %v1025, 1.442695
  %v1028 = vpow.pop %v1027
  %v1029 = vmul.f32 %v1026, 1.442695
  %v1030 = vpow.pop %v1029
  %v1031 = vadd.f32 %v1028, 1.0
  %v1032 = vadd.f32 %v1030, 1.0
  %v1033 = vrcp.pop %v1031
  %v1034 = vmul.f32 1.0, %v1033
  %v1035 = vrcp.pop %v1032
  %v1036 = vmul.f32 1.0, %v1035
  %v1037 = vtanh.pop %v1023
  %v1038 = vtanh.pop %v1024
  %v1039 = vmul.f32 %v1034, %v854
  %v1040 = vmul.f32 %v1036, %v855
  %1043 = vrot.lane.b32.xlu0 %v1037, 32
  %v1044 = vpop.permute.xlu0 %1043
  %1045 = vrot.lane.b32.xlu0 %v1038, 32
  %v1046 = vpop.permute.xlu0 %1045
  %v1049 = vmul.f32 %v1034, %v1044
  %v1050 = vmul.f32 %v1036, %v1046
  %1053 = vrot.lane.b32.xlu0 %v1049, 32
  %v1054 = vpop.permute.xlu0 %1053
  %1055 = vrot.lane.b32.xlu0 %v1050, 32
  %v1056 = vpop.permute.xlu0 %1055
  %v1059 = vadd.f32 %v1039, %v1054
  %v1060 = vadd.f32 %v1040, %v1056
  %v1061 = vtanh.pop %v1059
  %v1062 = vtanh.pop %v1060
  %1065 = vrot.lane.b32.xlu0 %v1061, 32
  %v1066 = vpop.permute.xlu0 %1065
  %1067 = vrot.lane.b32.xlu0 %v1062, 32
  %v1068 = vpop.permute.xlu0 %1067
  %v1071 = vmul.f32 %v1034, %v1066
  %v1072 = vmul.f32 %v1036, %v1068
  %1075 = vrot.lane.b32.xlu0 %v1071, 64
  %v1076 = vpop.permute.xlu0 %1075
  %1077 = vrot.lane.b32.xlu0 %v1072, 64
  %v1078 = vpop.permute.xlu0 %1077
  %1081 = vrot.lane.b32.xlu0 %v1071, 96
  %v1082 = vpop.permute.xlu0 %1081
  %1083 = vrot.lane.b32.xlu0 %v1072, 96
  %v1084 = vpop.permute.xlu0 %1083
  %v1087 = vsel %vm470, %v1076, %v1082
  %v1088 = vsel %vm470, %v1078, %v1084
  %v1089 = vmul.f32 %v1087, %v406
  %v1090 = vmul.f32 %v1088, %v407
  %v1091 = vpack.c.bf16 %v1090, %v1089
  %v1092 = vunpack.c.l.bf16 %v1091
  %v1093 = vunpack.c.h.bf16 %v1091
  %v1094 = vsub.f32 %v1089, %v1092
  %v1095 = vsub.f32 %v1090, %v1093
  %v1096 = vpack.c.bf16 %v1095, %v1094
  %v1098 = vsel %vm481, %v1091, 0
  %1100 = vmatprep.subr.bf16.mxu0 0
  %1101 = vmatpush1.bf16.msra.mxu0 %v388
  %1102 = vmatprep.subr.bf16.mxu0 0
  %1103 = vmatpush1.bf16.msra.mxu0 %v389
  %1104 = vmatprep.subr.bf16.mxu0 0
  %1105 = vmatpush1.bf16.msra.mxu0 %v390
  %1106 = vmatprep.subr.bf16.mxu0 0
  %1107 = vmatpush1.bf16.msra.mxu0 %v391
  %1108 = vmatprep.subr.bf16.mxu0 0
  %1109 = vmatpush1.bf16.msra.mxu0 0
  %1110 = vmatprep.subr.bf16.mxu0 0
  %1111 = vmatpush1.bf16.msra.mxu0 0
  %1112 = vmatprep.subr.bf16.mxu0 0
  %1113 = vmatpush1.bf16.msra.mxu0 0
  %1114 = vmatprep.subr.bf16.mxu0 0
  %1115 = vmatpush1.bf16.msra.mxu0 0
  %1116 = vmatprep.subr.bf16.mxu0 0
  %1117 = vmatpush1.bf16.msra.mxu0 0
  %1118 = vmatprep.subr.bf16.mxu0 0
  %1119 = vmatpush1.bf16.msra.mxu0 0
  %1120 = vmatprep.subr.bf16.mxu0 0
  %1121 = vmatpush1.bf16.msra.mxu0 0
  %1122 = vmatprep.subr.bf16.mxu0 0
  %1123 = vmatpush1.bf16.msra.mxu0 0
  %1124 = vmatprep.subr.bf16.mxu0 0
  %1125 = vmatpush1.bf16.msra.mxu0 0
  %1126 = vmatprep.subr.bf16.mxu0 0
  %1127 = vmatpush1.bf16.msra.mxu0 0
  %1128 = vmatprep.subr.bf16.mxu0 0
  %1129 = vmatpush1.bf16.msra.mxu0 0
  %1130 = vmatprep.subr.bf16.mxu0 0
  %1131 = vmatpush1.bf16.msra.mxu0 0
  %1132 = vmatprep.mubr.bf16.mxu0 0
  %1133 = vmatmul.mubr.bf16.gmra.mrb[0].mxu0 %v1098
  %v1134 = vpop.f32.mrb[0].mxu0
  %v1135 = vadd.f32 0.0, %v1134
  %v1136 = vpop.f32.mrb[0].mxu0
  %v1137 = vpop.f32.mrb[0].mxu0
  %v1138 = vadd.f32 0.0, %v1137
  %v1139 = vpop.f32.mrb[0].mxu0
  %1140 = vdwg.mxu0
  %1141 = vmatprep.subr.bf16.mxu0 0
  %1142 = vmatpush1.bf16.msra.mxu0 %v368
  %1143 = vmatprep.subr.bf16.mxu0 0
  %1144 = vmatpush1.bf16.msra.mxu0 %v369
  %1145 = vmatprep.subr.bf16.mxu0 0
  %1146 = vmatpush1.bf16.msra.mxu0 %v370
  %1147 = vmatprep.subr.bf16.mxu0 0
  %1148 = vmatpush1.bf16.msra.mxu0 %v371
  %1149 = vmatprep.subr.bf16.mxu0 0
  %1150 = vmatpush1.bf16.msra.mxu0 0
  %1151 = vmatprep.subr.bf16.mxu0 0
  %1152 = vmatpush1.bf16.msra.mxu0 0
  %1153 = vmatprep.subr.bf16.mxu0 0
  %1154 = vmatpush1.bf16.msra.mxu0 0
  %1155 = vmatprep.subr.bf16.mxu0 0
  %1156 = vmatpush1.bf16.msra.mxu0 0
  %1157 = vmatprep.subr.bf16.mxu0 0
  %1158 = vmatpush1.bf16.msra.mxu0 0
  %1159 = vmatprep.subr.bf16.mxu0 0
  %1160 = vmatpush1.bf16.msra.mxu0 0
  %1161 = vmatprep.subr.bf16.mxu0 0
  %1162 = vmatpush1.bf16.msra.mxu0 0
  %1163 = vmatprep.subr.bf16.mxu0 0
  %1164 = vmatpush1.bf16.msra.mxu0 0
  %1165 = vmatprep.subr.bf16.mxu0 0
  %1166 = vmatpush1.bf16.msra.mxu0 0
  %1167 = vmatprep.subr.bf16.mxu0 0
  %1168 = vmatpush1.bf16.msra.mxu0 0
  %1169 = vmatprep.subr.bf16.mxu0 0
  %1170 = vmatpush1.bf16.msra.mxu0 0
  %1171 = vmatprep.subr.bf16.mxu0 0
  %1172 = vmatpush1.bf16.msra.mxu0 0
  %1173 = vmatprep.mubr.bf16.mxu0 0
  %1174 = vmatmul.mubr.bf16.gmra.mrb[0].mxu0 %v1098
  %v1175 = vpop.f32.mrb[0].mxu0
  %v1176 = vadd.f32 %v1135, %v1175
  %v1177 = vpop.f32.mrb[0].mxu0
  %v1178 = vpop.f32.mrb[0].mxu0
  %v1179 = vadd.f32 %v1138, %v1178
  %v1180 = vpop.f32.mrb[0].mxu0
  %1181 = vdwg.mxu0
  %v1183 = vsel %vm481, %v1096, 0
  %1185 = vmatprep.subr.bf16.mxu0 0
  %1186 = vmatpush1.bf16.msra.mxu0 %v368
  %1187 = vmatprep.subr.bf16.mxu0 0
  %1188 = vmatpush1.bf16.msra.mxu0 %v369
  %1189 = vmatprep.subr.bf16.mxu0 0
  %1190 = vmatpush1.bf16.msra.mxu0 %v370
  %1191 = vmatprep.subr.bf16.mxu0 0
  %1192 = vmatpush1.bf16.msra.mxu0 %v371
  %1193 = vmatprep.subr.bf16.mxu0 0
  %1194 = vmatpush1.bf16.msra.mxu0 0
  %1195 = vmatprep.subr.bf16.mxu0 0
  %1196 = vmatpush1.bf16.msra.mxu0 0
  %1197 = vmatprep.subr.bf16.mxu0 0
  %1198 = vmatpush1.bf16.msra.mxu0 0
  %1199 = vmatprep.subr.bf16.mxu0 0
  %1200 = vmatpush1.bf16.msra.mxu0 0
  %1201 = vmatprep.subr.bf16.mxu0 0
  %1202 = vmatpush1.bf16.msra.mxu0 0
  %1203 = vmatprep.subr.bf16.mxu0 0
  %1204 = vmatpush1.bf16.msra.mxu0 0
  %1205 = vmatprep.subr.bf16.mxu0 0
  %1206 = vmatpush1.bf16.msra.mxu0 0
  %1207 = vmatprep.subr.bf16.mxu0 0
  %1208 = vmatpush1.bf16.msra.mxu0 0
  %1209 = vmatprep.subr.bf16.mxu0 0
  %1210 = vmatpush1.bf16.msra.mxu0 0
  %1211 = vmatprep.subr.bf16.mxu0 0
  %1212 = vmatpush1.bf16.msra.mxu0 0
  %1213 = vmatprep.subr.bf16.mxu0 0
  %1214 = vmatpush1.bf16.msra.mxu0 0
  %1215 = vmatprep.subr.bf16.mxu0 0
  %1216 = vmatpush1.bf16.msra.mxu0 0
  %1217 = vmatprep.mubr.bf16.mxu0 0
  %1218 = vmatmul.mubr.bf16.gmra.mrb[0].mxu0 %v1183
  %v1219 = vpop.f32.mrb[0].mxu0
  %v1220 = vadd.f32 0.0, %v1219
  %v1221 = vpop.f32.mrb[0].mxu0
  %v1222 = vpop.f32.mrb[0].mxu0
  %v1223 = vadd.f32 0.0, %v1222
  %v1224 = vpop.f32.mrb[0].mxu0
  %1225 = vdwg.mxu0
  %v1226 = vadd.f32 %v1176, %v1220
  %v1227 = vadd.f32 %v1179, %v1223
  %v1228 = vadd.f32 %v352, %v1226
  %v1229 = vadd.f32 %v351, %v1227
  %v1230 = vxor.u32 %v1228, 2147483648
  %v1231 = vxor.u32 %v1229, 2147483648
  %v1232 = vmul.f32 %v1230, 1.442695
  %v1233 = vpow.pop %v1232
  %v1234 = vmul.f32 %v1231, 1.442695
  %v1235 = vpow.pop %v1234
  %v1236 = vadd.f32 %v1233, 1.0
  %v1237 = vadd.f32 %v1235, 1.0
  %v1238 = vrcp.pop %v1236
  %v1239 = vmul.f32 1.0, %v1238
  %v1240 = vrcp.pop %v1237
  %v1241 = vmul.f32 1.0, %v1240
  %v1242 = vtanh.pop %v1228
  %v1243 = vtanh.pop %v1229
  %v1244 = vmul.f32 %v1239, %v1059
  %v1245 = vmul.f32 %v1241, %v1060
  %1248 = vrot.lane.b32.xlu0 %v1242, 32
  %v1249 = vpop.permute.xlu0 %1248
  %1250 = vrot.lane.b32.xlu0 %v1243, 32
  %v1251 = vpop.permute.xlu0 %1250
  %v1254 = vmul.f32 %v1239, %v1249
  %v1255 = vmul.f32 %v1241, %v1251
  %1258 = vrot.lane.b32.xlu0 %v1254, 32
  %v1259 = vpop.permute.xlu0 %1258
  %1260 = vrot.lane.b32.xlu0 %v1255, 32
  %v1261 = vpop.permute.xlu0 %1260
  %v1264 = vadd.f32 %v1244, %v1259
  %v1265 = vadd.f32 %v1245, %v1261
  %v1266 = vtanh.pop %v1264
  %v1267 = vtanh.pop %v1265
  %1270 = vrot.lane.b32.xlu0 %v1266, 32
  %v1271 = vpop.permute.xlu0 %1270
  %1272 = vrot.lane.b32.xlu0 %v1267, 32
  %v1273 = vpop.permute.xlu0 %1272
  %v1276 = vmul.f32 %v1239, %v1271
  %v1277 = vmul.f32 %v1241, %v1273
  %1280 = vrot.lane.b32.xlu0 %v1276, 64
  %v1281 = vpop.permute.xlu0 %1280
  %1282 = vrot.lane.b32.xlu0 %v1277, 64
  %v1283 = vpop.permute.xlu0 %1282
  %1286 = vrot.lane.b32.xlu0 %v1276, 96
  %v1287 = vpop.permute.xlu0 %1286
  %1288 = vrot.lane.b32.xlu0 %v1277, 96
  %v1289 = vpop.permute.xlu0 %1288
  %v1292 = vsel %vm470, %v1281, %v1287
  %v1293 = vsel %vm470, %v1283, %v1289
  %v1294 = vmul.f32 %v1292, %v406
  %v1295 = vmul.f32 %v1293, %v407
  %v1296 = vpack.c.bf16 %v1295, %v1294
  %v1297 = vunpack.c.l.bf16 %v1296
  %v1298 = vunpack.c.h.bf16 %v1296
  %v1299 = vsub.f32 %v1294, %v1297
  %v1300 = vsub.f32 %v1295, %v1298
  %v1301 = vpack.c.bf16 %v1300, %v1299
  %v1303 = vsel %vm481, %v1296, 0
  %1305 = vmatprep.subr.bf16.mxu0 0
  %1306 = vmatpush1.bf16.msra.mxu0 %v388
  %1307 = vmatprep.subr.bf16.mxu0 0
  %1308 = vmatpush1.bf16.msra.mxu0 %v389
  %1309 = vmatprep.subr.bf16.mxu0 0
  %1310 = vmatpush1.bf16.msra.mxu0 %v390
  %1311 = vmatprep.subr.bf16.mxu0 0
  %1312 = vmatpush1.bf16.msra.mxu0 %v391
  %1313 = vmatprep.subr.bf16.mxu0 0
  %1314 = vmatpush1.bf16.msra.mxu0 0
  %1315 = vmatprep.subr.bf16.mxu0 0
  %1316 = vmatpush1.bf16.msra.mxu0 0
  %1317 = vmatprep.subr.bf16.mxu0 0
  %1318 = vmatpush1.bf16.msra.mxu0 0
  %1319 = vmatprep.subr.bf16.mxu0 0
  %1320 = vmatpush1.bf16.msra.mxu0 0
  %1321 = vmatprep.subr.bf16.mxu0 0
  %1322 = vmatpush1.bf16.msra.mxu0 0
  %1323 = vmatprep.subr.bf16.mxu0 0
  %1324 = vmatpush1.bf16.msra.mxu0 0
  %1325 = vmatprep.subr.bf16.mxu0 0
  %1326 = vmatpush1.bf16.msra.mxu0 0
  %1327 = vmatprep.subr.bf16.mxu0 0
  %1328 = vmatpush1.bf16.msra.mxu0 0
  %1329 = vmatprep.subr.bf16.mxu0 0
  %1330 = vmatpush1.bf16.msra.mxu0 0
  %1331 = vmatprep.subr.bf16.mxu0 0
  %1332 = vmatpush1.bf16.msra.mxu0 0
  %1333 = vmatprep.subr.bf16.mxu0 0
  %1334 = vmatpush1.bf16.msra.mxu0 0
  %1335 = vmatprep.subr.bf16.mxu0 0
  %1336 = vmatpush1.bf16.msra.mxu0 0
  %1337 = vmatprep.mubr.bf16.mxu0 0
  %1338 = vmatmul.mubr.bf16.gmra.mrb[0].mxu0 %v1303
  %v1339 = vpop.f32.mrb[0].mxu0
  %v1340 = vadd.f32 0.0, %v1339
  %v1341 = vpop.f32.mrb[0].mxu0
  %v1342 = vpop.f32.mrb[0].mxu0
  %v1343 = vadd.f32 0.0, %v1342
  %v1344 = vpop.f32.mrb[0].mxu0
  %1345 = vdwg.mxu0
  %1346 = vmatprep.subr.bf16.mxu0 0
  %1347 = vmatpush1.bf16.msra.mxu0 %v368
  %1348 = vmatprep.subr.bf16.mxu0 0
  %1349 = vmatpush1.bf16.msra.mxu0 %v369
  %1350 = vmatprep.subr.bf16.mxu0 0
  %1351 = vmatpush1.bf16.msra.mxu0 %v370
  %1352 = vmatprep.subr.bf16.mxu0 0
  %1353 = vmatpush1.bf16.msra.mxu0 %v371
  %1354 = vmatprep.subr.bf16.mxu0 0
  %1355 = vmatpush1.bf16.msra.mxu0 0
  %1356 = vmatprep.subr.bf16.mxu0 0
  %1357 = vmatpush1.bf16.msra.mxu0 0
  %1358 = vmatprep.subr.bf16.mxu0 0
  %1359 = vmatpush1.bf16.msra.mxu0 0
  %1360 = vmatprep.subr.bf16.mxu0 0
  %1361 = vmatpush1.bf16.msra.mxu0 0
  %1362 = vmatprep.subr.bf16.mxu0 0
  %1363 = vmatpush1.bf16.msra.mxu0 0
  %1364 = vmatprep.subr.bf16.mxu0 0
  %1365 = vmatpush1.bf16.msra.mxu0 0
  %1366 = vmatprep.subr.bf16.mxu0 0
  %1367 = vmatpush1.bf16.msra.mxu0 0
  %1368 = vmatprep.subr.bf16.mxu0 0
  %1369 = vmatpush1.bf16.msra.mxu0 0
  %1370 = vmatprep.subr.bf16.mxu0 0
  %1371 = vmatpush1.bf16.msra.mxu0 0
  %1372 = vmatprep.subr.bf16.mxu0 0
  %1373 = vmatpush1.bf16.msra.mxu0 0
  %1374 = vmatprep.subr.bf16.mxu0 0
  %1375 = vmatpush1.bf16.msra.mxu0 0
  %1376 = vmatprep.subr.bf16.mxu0 0
  %1377 = vmatpush1.bf16.msra.mxu0 0
  %1378 = vmatprep.mubr.bf16.mxu0 0
  %1379 = vmatmul.mubr.bf16.gmra.mrb[0].mxu0 %v1303
  %v1380 = vpop.f32.mrb[0].mxu0
  %v1381 = vadd.f32 %v1340, %v1380
  %v1382 = vpop.f32.mrb[0].mxu0
  %v1383 = vpop.f32.mrb[0].mxu0
  %v1384 = vadd.f32 %v1343, %v1383
  %v1385 = vpop.f32.mrb[0].mxu0
  %1386 = vdwg.mxu0
  %v1388 = vsel %vm481, %v1301, 0
  %1390 = vmatprep.subr.bf16.mxu0 0
  %1391 = vmatpush1.bf16.msra.mxu0 %v368
  %1392 = vmatprep.subr.bf16.mxu0 0
  %1393 = vmatpush1.bf16.msra.mxu0 %v369
  %1394 = vmatprep.subr.bf16.mxu0 0
  %1395 = vmatpush1.bf16.msra.mxu0 %v370
  %1396 = vmatprep.subr.bf16.mxu0 0
  %1397 = vmatpush1.bf16.msra.mxu0 %v371
  %1398 = vmatprep.subr.bf16.mxu0 0
  %1399 = vmatpush1.bf16.msra.mxu0 0
  %1400 = vmatprep.subr.bf16.mxu0 0
  %1401 = vmatpush1.bf16.msra.mxu0 0
  %1402 = vmatprep.subr.bf16.mxu0 0
  %1403 = vmatpush1.bf16.msra.mxu0 0
  %1404 = vmatprep.subr.bf16.mxu0 0
  %1405 = vmatpush1.bf16.msra.mxu0 0
  %1406 = vmatprep.subr.bf16.mxu0 0
  %1407 = vmatpush1.bf16.msra.mxu0 0
  %1408 = vmatprep.subr.bf16.mxu0 0
  %1409 = vmatpush1.bf16.msra.mxu0 0
  %1410 = vmatprep.subr.bf16.mxu0 0
  %1411 = vmatpush1.bf16.msra.mxu0 0
  %1412 = vmatprep.subr.bf16.mxu0 0
  %1413 = vmatpush1.bf16.msra.mxu0 0
  %1414 = vmatprep.subr.bf16.mxu0 0
  %1415 = vmatpush1.bf16.msra.mxu0 0
  %1416 = vmatprep.subr.bf16.mxu0 0
  %1417 = vmatpush1.bf16.msra.mxu0 0
  %1418 = vmatprep.subr.bf16.mxu0 0
  %1419 = vmatpush1.bf16.msra.mxu0 0
  %1420 = vmatprep.subr.bf16.mxu0 0
  %1421 = vmatpush1.bf16.msra.mxu0 0
  %1422 = vmatprep.mubr.bf16.mxu0 0
  %1423 = vmatmul.mubr.bf16.gmra.mrb[0].mxu0 %v1388
  %v1424 = vpop.f32.mrb[0].mxu0
  %v1425 = vadd.f32 0.0, %v1424
  %v1426 = vpop.f32.mrb[0].mxu0
  %v1427 = vpop.f32.mrb[0].mxu0
  %v1428 = vadd.f32 0.0, %v1427
  %v1429 = vpop.f32.mrb[0].mxu0
  %1430 = vdwg.mxu0
  %v1431 = vadd.f32 %v1381, %v1425
  %v1432 = vadd.f32 %v1384, %v1428
  %v1433 = vadd.f32 %v354, %v1431
  %v1434 = vadd.f32 %v349, %v1432
  %v1435 = vxor.u32 %v1433, 2147483648
  %v1436 = vxor.u32 %v1434, 2147483648
  %v1437 = vmul.f32 %v1435, 1.442695
  %v1438 = vpow.pop %v1437
  %v1439 = vmul.f32 %v1436, 1.442695
  %v1440 = vpow.pop %v1439
  %v1441 = vadd.f32 %v1438, 1.0
  %v1442 = vadd.f32 %v1440, 1.0
  %v1443 = vrcp.pop %v1441
  %v1444 = vmul.f32 1.0, %v1443
  %v1445 = vrcp.pop %v1442
  %v1446 = vmul.f32 1.0, %v1445
  %v1447 = vtanh.pop %v1433
  %v1448 = vtanh.pop %v1434
  %v1449 = vmul.f32 %v1444, %v1264
  %v1450 = vmul.f32 %v1446, %v1265
  %1453 = vrot.lane.b32.xlu0 %v1447, 32
  %v1454 = vpop.permute.xlu0 %1453
  %1455 = vrot.lane.b32.xlu0 %v1448, 32
  %v1456 = vpop.permute.xlu0 %1455
  %v1459 = vmul.f32 %v1444, %v1454
  %v1460 = vmul.f32 %v1446, %v1456
  %1463 = vrot.lane.b32.xlu0 %v1459, 32
  %v1464 = vpop.permute.xlu0 %1463
  %1465 = vrot.lane.b32.xlu0 %v1460, 32
  %v1466 = vpop.permute.xlu0 %1465
  %v1469 = vadd.f32 %v1449, %v1464
  %v1470 = vadd.f32 %v1450, %v1466
  %v1471 = vtanh.pop %v1469
  %v1472 = vtanh.pop %v1470
  %1475 = vrot.lane.b32.xlu0 %v1471, 32
  %v1476 = vpop.permute.xlu0 %1475
  %1477 = vrot.lane.b32.xlu0 %v1472, 32
  %v1478 = vpop.permute.xlu0 %1477
  %v1481 = vmul.f32 %v1444, %v1476
  %v1482 = vmul.f32 %v1446, %v1478
  %1485 = vrot.lane.b32.xlu0 %v1481, 64
  %v1486 = vpop.permute.xlu0 %1485
  %1487 = vrot.lane.b32.xlu0 %v1482, 64
  %v1488 = vpop.permute.xlu0 %1487
  %1491 = vrot.lane.b32.xlu0 %v1481, 96
  %v1492 = vpop.permute.xlu0 %1491
  %1493 = vrot.lane.b32.xlu0 %v1482, 96
  %v1494 = vpop.permute.xlu0 %1493
  %v1497 = vsel %vm470, %v1486, %v1492
  %v1498 = vsel %vm470, %v1488, %v1494
  %v1499 = vmul.f32 %v1497, %v406
  %v1500 = vmul.f32 %v1498, %v407
  %v1501 = vpack.c.bf16 %v1500, %v1499
  %v1502 = vunpack.c.l.bf16 %v1501
  %v1503 = vunpack.c.h.bf16 %v1501
  %v1504 = vsub.f32 %v1499, %v1502
  %v1505 = vsub.f32 %v1500, %v1503
  %v1506 = vpack.c.bf16 %v1505, %v1504
  %v1508 = vsel %vm481, %v1501, 0
  %1510 = vmatprep.subr.bf16.mxu0 0
  %1511 = vmatpush1.bf16.msra.mxu0 %v388
  %1512 = vmatprep.subr.bf16.mxu0 0
  %1513 = vmatpush1.bf16.msra.mxu0 %v389
  %1514 = vmatprep.subr.bf16.mxu0 0
  %1515 = vmatpush1.bf16.msra.mxu0 %v390
  %1516 = vmatprep.subr.bf16.mxu0 0
  %1517 = vmatpush1.bf16.msra.mxu0 %v391
  %1518 = vmatprep.subr.bf16.mxu0 0
  %1519 = vmatpush1.bf16.msra.mxu0 0
  %1520 = vmatprep.subr.bf16.mxu0 0
  %1521 = vmatpush1.bf16.msra.mxu0 0
  %1522 = vmatprep.subr.bf16.mxu0 0
  %1523 = vmatpush1.bf16.msra.mxu0 0
  %1524 = vmatprep.subr.bf16.mxu0 0
  %1525 = vmatpush1.bf16.msra.mxu0 0
  %1526 = vmatprep.subr.bf16.mxu0 0
  %1527 = vmatpush1.bf16.msra.mxu0 0
  %1528 = vmatprep.subr.bf16.mxu0 0
  %1529 = vmatpush1.bf16.msra.mxu0 0
  %1530 = vmatprep.subr.bf16.mxu0 0
  %1531 = vmatpush1.bf16.msra.mxu0 0
  %1532 = vmatprep.subr.bf16.mxu0 0
  %1533 = vmatpush1.bf16.msra.mxu0 0
  %1534 = vmatprep.subr.bf16.mxu0 0
  %1535 = vmatpush1.bf16.msra.mxu0 0
  %1536 = vmatprep.subr.bf16.mxu0 0
  %1537 = vmatpush1.bf16.msra.mxu0 0
  %1538 = vmatprep.subr.bf16.mxu0 0
  %1539 = vmatpush1.bf16.msra.mxu0 0
  %1540 = vmatprep.subr.bf16.mxu0 0
  %1541 = vmatpush1.bf16.msra.mxu0 0
  %1542 = vmatprep.mubr.bf16.mxu0 0
  %1543 = vmatmul.mubr.bf16.gmra.mrb[0].mxu0 %v1508
  %v1544 = vpop.f32.mrb[0].mxu0
  %v1545 = vadd.f32 0.0, %v1544
  %v1546 = vpop.f32.mrb[0].mxu0
  %v1547 = vpop.f32.mrb[0].mxu0
  %v1548 = vadd.f32 0.0, %v1547
  %v1549 = vpop.f32.mrb[0].mxu0
  %1550 = vdwg.mxu0
  %1551 = vmatprep.subr.bf16.mxu0 0
  %1552 = vmatpush1.bf16.msra.mxu0 %v368
  %1553 = vmatprep.subr.bf16.mxu0 0
  %1554 = vmatpush1.bf16.msra.mxu0 %v369
  %1555 = vmatprep.subr.bf16.mxu0 0
  %1556 = vmatpush1.bf16.msra.mxu0 %v370
  %1557 = vmatprep.subr.bf16.mxu0 0
  %1558 = vmatpush1.bf16.msra.mxu0 %v371
  %1559 = vmatprep.subr.bf16.mxu0 0
  %1560 = vmatpush1.bf16.msra.mxu0 0
  %1561 = vmatprep.subr.bf16.mxu0 0
  %1562 = vmatpush1.bf16.msra.mxu0 0
  %1563 = vmatprep.subr.bf16.mxu0 0
  %1564 = vmatpush1.bf16.msra.mxu0 0
  %1565 = vmatprep.subr.bf16.mxu0 0
  %1566 = vmatpush1.bf16.msra.mxu0 0
  %1567 = vmatprep.subr.bf16.mxu0 0
  %1568 = vmatpush1.bf16.msra.mxu0 0
  %1569 = vmatprep.subr.bf16.mxu0 0
  %1570 = vmatpush1.bf16.msra.mxu0 0
  %1571 = vmatprep.subr.bf16.mxu0 0
  %1572 = vmatpush1.bf16.msra.mxu0 0
  %1573 = vmatprep.subr.bf16.mxu0 0
  %1574 = vmatpush1.bf16.msra.mxu0 0
  %1575 = vmatprep.subr.bf16.mxu0 0
  %1576 = vmatpush1.bf16.msra.mxu0 0
  %1577 = vmatprep.subr.bf16.mxu0 0
  %1578 = vmatpush1.bf16.msra.mxu0 0
  %1579 = vmatprep.subr.bf16.mxu0 0
  %1580 = vmatpush1.bf16.msra.mxu0 0
  %1581 = vmatprep.subr.bf16.mxu0 0
  %1582 = vmatpush1.bf16.msra.mxu0 0
  %1583 = vmatprep.mubr.bf16.mxu0 0
  %1584 = vmatmul.mubr.bf16.gmra.mrb[0].mxu0 %v1508
  %v1585 = vpop.f32.mrb[0].mxu0
  %v1586 = vadd.f32 %v1545, %v1585
  %v1587 = vpop.f32.mrb[0].mxu0
  %v1588 = vpop.f32.mrb[0].mxu0
  %v1589 = vadd.f32 %v1548, %v1588
  %v1590 = vpop.f32.mrb[0].mxu0
  %1591 = vdwg.mxu0
  %v1593 = vsel %vm481, %v1506, 0
  %1595 = vmatprep.subr.bf16.mxu0 0
  %1596 = vmatpush1.bf16.msra.mxu0 %v368
  %1597 = vmatprep.subr.bf16.mxu0 0
  %1598 = vmatpush1.bf16.msra.mxu0 %v369
  %1599 = vmatprep.subr.bf16.mxu0 0
  %1600 = vmatpush1.bf16.msra.mxu0 %v370
  %1601 = vmatprep.subr.bf16.mxu0 0
  %1602 = vmatpush1.bf16.msra.mxu0 %v371
  %1603 = vmatprep.subr.bf16.mxu0 0
  %1604 = vmatpush1.bf16.msra.mxu0 0
  %1605 = vmatprep.subr.bf16.mxu0 0
  %1606 = vmatpush1.bf16.msra.mxu0 0
  %1607 = vmatprep.subr.bf16.mxu0 0
  %1608 = vmatpush1.bf16.msra.mxu0 0
  %1609 = vmatprep.subr.bf16.mxu0 0
  %1610 = vmatpush1.bf16.msra.mxu0 0
  %1611 = vmatprep.subr.bf16.mxu0 0
  %1612 = vmatpush1.bf16.msra.mxu0 0
  %1613 = vmatprep.subr.bf16.mxu0 0
  %1614 = vmatpush1.bf16.msra.mxu0 0
  %1615 = vmatprep.subr.bf16.mxu0 0
  %1616 = vmatpush1.bf16.msra.mxu0 0
  %1617 = vmatprep.subr.bf16.mxu0 0
  %1618 = vmatpush1.bf16.msra.mxu0 0
  %1619 = vmatprep.subr.bf16.mxu0 0
  %1620 = vmatpush1.bf16.msra.mxu0 0
  %1621 = vmatprep.subr.bf16.mxu0 0
  %1622 = vmatpush1.bf16.msra.mxu0 0
  %1623 = vmatprep.subr.bf16.mxu0 0
  %1624 = vmatpush1.bf16.msra.mxu0 0
  %1625 = vmatprep.subr.bf16.mxu0 0
  %1626 = vmatpush1.bf16.msra.mxu0 0
  %1627 = vmatprep.mubr.bf16.mxu0 0
  %1628 = vmatmul.mubr.bf16.gmra.mrb[0].mxu0 %v1593
  %v1629 = vpop.f32.mrb[0].mxu0
  %v1630 = vadd.f32 0.0, %v1629
  %v1631 = vpop.f32.mrb[0].mxu0
  %v1632 = vpop.f32.mrb[0].mxu0
  %v1633 = vadd.f32 0.0, %v1632
  %v1634 = vpop.f32.mrb[0].mxu0
  %1635 = vdwg.mxu0
  %v1636 = vadd.f32 %v1586, %v1630
  %v1637 = vadd.f32 %v1589, %v1633
  %v1638 = vadd.f32 %v356, %v1636
  %v1639 = vadd.f32 %v347, %v1637
  %v1640 = vxor.u32 %v1638, 2147483648
  %v1641 = vxor.u32 %v1639, 2147483648
  %v1642 = vmul.f32 %v1640, 1.442695
  %v1643 = vpow.pop %v1642
  %v1644 = vmul.f32 %v1641, 1.442695
  %v1645 = vpow.pop %v1644
  %v1646 = vadd.f32 %v1643, 1.0
  %v1647 = vadd.f32 %v1645, 1.0
  %v1648 = vrcp.pop %v1646
  %v1649 = vmul.f32 1.0, %v1648
  %v1650 = vrcp.pop %v1647
  %v1651 = vmul.f32 1.0, %v1650
  %v1652 = vtanh.pop %v1638
  %v1653 = vtanh.pop %v1639
  %v1654 = vmul.f32 %v1649, %v1469
  %v1655 = vmul.f32 %v1651, %v1470
  %1658 = vrot.lane.b32.xlu0 %v1652, 32
  %v1659 = vpop.permute.xlu0 %1658
  %1660 = vrot.lane.b32.xlu0 %v1653, 32
  %v1661 = vpop.permute.xlu0 %1660
  %v1664 = vmul.f32 %v1649, %v1659
  %v1665 = vmul.f32 %v1651, %v1661
  %1668 = vrot.lane.b32.xlu0 %v1664, 32
  %v1669 = vpop.permute.xlu0 %1668
  %1670 = vrot.lane.b32.xlu0 %v1665, 32
  %v1671 = vpop.permute.xlu0 %1670
  %v1674 = vadd.f32 %v1654, %v1669
  %v1675 = vadd.f32 %v1655, %v1671
  %v1676 = vtanh.pop %v1674
  %v1677 = vtanh.pop %v1675
  %1680 = vrot.lane.b32.xlu0 %v1676, 32
  %v1681 = vpop.permute.xlu0 %1680
  %1682 = vrot.lane.b32.xlu0 %v1677, 32
  %v1683 = vpop.permute.xlu0 %1682
  %v1686 = vmul.f32 %v1649, %v1681
  %v1687 = vmul.f32 %v1651, %v1683
  %1690 = vrot.lane.b32.xlu0 %v1686, 64
  %v1691 = vpop.permute.xlu0 %1690
  %1692 = vrot.lane.b32.xlu0 %v1687, 64
  %v1693 = vpop.permute.xlu0 %1692
  %1696 = vrot.lane.b32.xlu0 %v1686, 96
  %v1697 = vpop.permute.xlu0 %1696
  %1698 = vrot.lane.b32.xlu0 %v1687, 96
  %v1699 = vpop.permute.xlu0 %1698
  %v1702 = vsel %vm470, %v1691, %v1697
  %v1703 = vsel %vm470, %v1693, %v1699
  %v1704 = vmul.f32 %v1702, %v406
  %v1705 = vmul.f32 %v1703, %v407
  %v1706 = vpack.c.bf16 %v1705, %v1704
  %v1707 = vunpack.c.l.bf16 %v1706
  %v1708 = vunpack.c.h.bf16 %v1706
  %v1709 = vsub.f32 %v1704, %v1707
  %v1710 = vsub.f32 %v1705, %v1708
  %v1711 = vpack.c.bf16 %v1710, %v1709
  %v1713 = vsel %vm481, %v1706, 0
  %1715 = vmatprep.subr.bf16.mxu0 0
  %1716 = vmatpush1.bf16.msra.mxu0 %v388
  %1717 = vmatprep.subr.bf16.mxu0 0
  %1718 = vmatpush1.bf16.msra.mxu0 %v389
  %1719 = vmatprep.subr.bf16.mxu0 0
  %1720 = vmatpush1.bf16.msra.mxu0 %v390
  %1721 = vmatprep.subr.bf16.mxu0 0
  %1722 = vmatpush1.bf16.msra.mxu0 %v391
  %1723 = vmatprep.subr.bf16.mxu0 0
  %1724 = vmatpush1.bf16.msra.mxu0 0
  %1725 = vmatprep.subr.bf16.mxu0 0
  %1726 = vmatpush1.bf16.msra.mxu0 0
  %1727 = vmatprep.subr.bf16.mxu0 0
  %1728 = vmatpush1.bf16.msra.mxu0 0
  %1729 = vmatprep.subr.bf16.mxu0 0
  %1730 = vmatpush1.bf16.msra.mxu0 0
  %1731 = vmatprep.subr.bf16.mxu0 0
  %1732 = vmatpush1.bf16.msra.mxu0 0
  %1733 = vmatprep.subr.bf16.mxu0 0
  %1734 = vmatpush1.bf16.msra.mxu0 0
  %1735 = vmatprep.subr.bf16.mxu0 0
  %1736 = vmatpush1.bf16.msra.mxu0 0
  %1737 = vmatprep.subr.bf16.mxu0 0
  %1738 = vmatpush1.bf16.msra.mxu0 0
  %1739 = vmatprep.subr.bf16.mxu0 0
  %1740 = vmatpush1.bf16.msra.mxu0 0
  %1741 = vmatprep.subr.bf16.mxu0 0
  %1742 = vmatpush1.bf16.msra.mxu0 0
  %1743 = vmatprep.subr.bf16.mxu0 0
  %1744 = vmatpush1.bf16.msra.mxu0 0
  %1745 = vmatprep.subr.bf16.mxu0 0
  %1746 = vmatpush1.bf16.msra.mxu0 0
  %1747 = vmatprep.mubr.bf16.mxu0 0
  %1748 = vmatmul.mubr.bf16.gmra.mrb[0].mxu0 %v1713
  %v1749 = vpop.f32.mrb[0].mxu0
  %v1750 = vadd.f32 0.0, %v1749
  %v1751 = vpop.f32.mrb[0].mxu0
  %v1752 = vpop.f32.mrb[0].mxu0
  %v1753 = vadd.f32 0.0, %v1752
  %v1754 = vpop.f32.mrb[0].mxu0
  %1755 = vdwg.mxu0
  %1756 = vmatprep.subr.bf16.mxu0 0
  %1757 = vmatpush1.bf16.msra.mxu0 %v368
  %1758 = vmatprep.subr.bf16.mxu0 0
  %1759 = vmatpush1.bf16.msra.mxu0 %v369
  %1760 = vmatprep.subr.bf16.mxu0 0
  %1761 = vmatpush1.bf16.msra.mxu0 %v370
  %1762 = vmatprep.subr.bf16.mxu0 0
  %1763 = vmatpush1.bf16.msra.mxu0 %v371
  %1764 = vmatprep.subr.bf16.mxu0 0
  %1765 = vmatpush1.bf16.msra.mxu0 0
  %1766 = vmatprep.subr.bf16.mxu0 0
  %1767 = vmatpush1.bf16.msra.mxu0 0
  %1768 = vmatprep.subr.bf16.mxu0 0
  %1769 = vmatpush1.bf16.msra.mxu0 0
  %1770 = vmatprep.subr.bf16.mxu0 0
  %1771 = vmatpush1.bf16.msra.mxu0 0
  %1772 = vmatprep.subr.bf16.mxu0 0
  %1773 = vmatpush1.bf16.msra.mxu0 0
  %1774 = vmatprep.subr.bf16.mxu0 0
  %1775 = vmatpush1.bf16.msra.mxu0 0
  %1776 = vmatprep.subr.bf16.mxu0 0
  %1777 = vmatpush1.bf16.msra.mxu0 0
  %1778 = vmatprep.subr.bf16.mxu0 0
  %1779 = vmatpush1.bf16.msra.mxu0 0
  %1780 = vmatprep.subr.bf16.mxu0 0
  %1781 = vmatpush1.bf16.msra.mxu0 0
  %1782 = vmatprep.subr.bf16.mxu0 0
  %1783 = vmatpush1.bf16.msra.mxu0 0
  %1784 = vmatprep.subr.bf16.mxu0 0
  %1785 = vmatpush1.bf16.msra.mxu0 0
  %1786 = vmatprep.subr.bf16.mxu0 0
  %1787 = vmatpush1.bf16.msra.mxu0 0
  %1788 = vmatprep.mubr.bf16.mxu0 0
  %1789 = vmatmul.mubr.bf16.gmra.mrb[0].mxu0 %v1713
  %v1790 = vpop.f32.mrb[0].mxu0
  %v1791 = vadd.f32 %v1750, %v1790
  %v1792 = vpop.f32.mrb[0].mxu0
  %v1793 = vpop.f32.mrb[0].mxu0
  %v1794 = vadd.f32 %v1753, %v1793
  %v1795 = vpop.f32.mrb[0].mxu0
  %1796 = vdwg.mxu0
  %v1798 = vsel %vm481, %v1711, 0
  %1800 = vmatprep.subr.bf16.mxu0 0
  %1801 = vmatpush1.bf16.msra.mxu0 %v368
  %1802 = vmatprep.subr.bf16.mxu0 0
  %1803 = vmatpush1.bf16.msra.mxu0 %v369
  %1804 = vmatprep.subr.bf16.mxu0 0
  %1805 = vmatpush1.bf16.msra.mxu0 %v370
  %1806 = vmatprep.subr.bf16.mxu0 0
  %1807 = vmatpush1.bf16.msra.mxu0 %v371
  %1808 = vmatprep.subr.bf16.mxu0 0
  %1809 = vmatpush1.bf16.msra.mxu0 0
  %1810 = vmatprep.subr.bf16.mxu0 0
  %1811 = vmatpush1.bf16.msra.mxu0 0
  %1812 = vmatprep.subr.bf16.mxu0 0
  %1813 = vmatpush1.bf16.msra.mxu0 0
  %1814 = vmatprep.subr.bf16.mxu0 0
  %1815 = vmatpush1.bf16.msra.mxu0 0
  %1816 = vmatprep.subr.bf16.mxu0 0
  %1817 = vmatpush1.bf16.msra.mxu0 0
  %1818 = vmatprep.subr.bf16.mxu0 0
  %1819 = vmatpush1.bf16.msra.mxu0 0
  %1820 = vmatprep.subr.bf16.mxu0 0
  %1821 = vmatpush1.bf16.msra.mxu0 0
  %1822 = vmatprep.subr.bf16.mxu0 0
  %1823 = vmatpush1.bf16.msra.mxu0 0
  %1824 = vmatprep.subr.bf16.mxu0 0
  %1825 = vmatpush1.bf16.msra.mxu0 0
  %1826 = vmatprep.subr.bf16.mxu0 0
  %1827 = vmatpush1.bf16.msra.mxu0 0
  %1828 = vmatprep.subr.bf16.mxu0 0
  %1829 = vmatpush1.bf16.msra.mxu0 0
  %1830 = vmatprep.subr.bf16.mxu0 0
  %1831 = vmatpush1.bf16.msra.mxu0 0
  %1832 = vmatprep.mubr.bf16.mxu0 0
  %1833 = vmatmul.mubr.bf16.gmra.mrb[0].mxu0 %v1798
  %v1834 = vpop.f32.mrb[0].mxu0
  %v1835 = vadd.f32 0.0, %v1834
  %v1836 = vpop.f32.mrb[0].mxu0
  %v1837 = vpop.f32.mrb[0].mxu0
  %v1838 = vadd.f32 0.0, %v1837
  %v1839 = vpop.f32.mrb[0].mxu0
  %1840 = vdwg.mxu0
  %v1841 = vadd.f32 %v1791, %v1835
  %v1842 = vadd.f32 %v1794, %v1838
  %v1843 = vadd.f32 %v358, %v1841
  %v1844 = vadd.f32 %v345, %v1842
  %v1845 = vxor.u32 %v1843, 2147483648
  %v1846 = vxor.u32 %v1844, 2147483648
  %v1847 = vmul.f32 %v1845, 1.442695
  %v1848 = vpow.pop %v1847
  %v1849 = vmul.f32 %v1846, 1.442695
  %v1850 = vpow.pop %v1849
  %v1851 = vadd.f32 %v1848, 1.0
  %v1852 = vadd.f32 %v1850, 1.0
  %v1853 = vrcp.pop %v1851
  %v1854 = vmul.f32 1.0, %v1853
  %v1855 = vrcp.pop %v1852
  %v1856 = vmul.f32 1.0, %v1855
  %v1857 = vtanh.pop %v1843
  %v1858 = vtanh.pop %v1844
  %v1859 = vmul.f32 %v1854, %v1674
  %v1860 = vmul.f32 %v1856, %v1675
  %1863 = vrot.lane.b32.xlu0 %v1857, 32
  %v1864 = vpop.permute.xlu0 %1863
  %1865 = vrot.lane.b32.xlu0 %v1858, 32
  %v1866 = vpop.permute.xlu0 %1865
  %v1869 = vmul.f32 %v1854, %v1864
  %v1870 = vmul.f32 %v1856, %v1866
  %1873 = vrot.lane.b32.xlu0 %v1869, 32
  %v1874 = vpop.permute.xlu0 %1873
  %1875 = vrot.lane.b32.xlu0 %v1870, 32
  %v1876 = vpop.permute.xlu0 %1875
  %v1879 = vadd.f32 %v1859, %v1874
  %v1880 = vadd.f32 %v1860, %v1876
  %v1881 = vtanh.pop %v1879
  %v1882 = vtanh.pop %v1880
  %1885 = vrot.lane.b32.xlu0 %v1881, 32
  %v1886 = vpop.permute.xlu0 %1885
  %1887 = vrot.lane.b32.xlu0 %v1882, 32
  %v1888 = vpop.permute.xlu0 %1887
  %v1891 = vmul.f32 %v1854, %v1886
  %v1892 = vmul.f32 %v1856, %v1888
  %1894 = vrot.lane.b32.xlu0 %v1892, 96
  %v1895 = vpop.permute.xlu0 %1894
  %v1897 = vsel %vm470, %v459, %v1895
  %v1898 = vsel %vm470, %v666, %v1699
  %v1899 = vsel %vm470, %v871, %v1494
  %v1900 = vsel %vm470, %v1076, %v1289
  %v1901 = vsel %vm470, %v1281, %v1084
  %v1902 = vsel %vm470, %v1486, %v879
  %v1903 = vsel %vm470, %v1691, %v674
  %1905 = vrot.lane.b32.xlu0 %v1891, 64
  %v1906 = vpop.permute.xlu0 %1905
  %v1908 = vsel %vm470, %v1906, %v467
  %v1909 = vpack.c.bf16 %v1898, %v1897
  %v1910 = vpack.c.bf16 %v1900, %v1899
  %v1911 = vpack.c.bf16 %v1902, %v1901
  %v1912 = vpack.c.bf16 %v1908, %v1903
  %v1913 = vunpack.c.l.bf16 %v1909
  %v1914 = vunpack.c.h.bf16 %v1909
  %v1915 = vunpack.c.l.bf16 %v1910
  %v1916 = vunpack.c.h.bf16 %v1910
  %v1917 = vunpack.c.l.bf16 %v1911
  %v1918 = vunpack.c.h.bf16 %v1911
  %v1919 = vunpack.c.l.bf16 %v1912
  %v1920 = vunpack.c.h.bf16 %v1912
  %v1921 = vsub.f32 %v1897, %v1913
  %v1922 = vsub.f32 %v1898, %v1914
  %v1923 = vsub.f32 %v1899, %v1915
  %v1924 = vsub.f32 %v1900, %v1916
  %v1925 = vsub.f32 %v1901, %v1917
  %v1926 = vsub.f32 %v1902, %v1918
  %v1927 = vsub.f32 %v1903, %v1919
  %v1928 = vsub.f32 %v1908, %v1920
  %v1929 = vpack.c.bf16 %v1922, %v1921
  %v1930 = vpack.c.bf16 %v1924, %v1923
  %v1931 = vpack.c.bf16 %v1926, %v1925
  %v1932 = vpack.c.bf16 %v1928, %v1927
  %v1933 = vld [vmem:[%s4] sm:$0xff]
  %v1934 = vld [vmem:[%s4 + $0x8] sm:$0xff]
  %v1935 = vld [vmem:[%s4 + $0x10] sm:$0xff]
  %v1936 = vld [vmem:[%s4 + $0x18] sm:$0xff]
  %v1937 = vld [vmem:[%s4 + $0x20] sm:$0xff]
  %v1938 = vld [vmem:[%s4 + $0x28] sm:$0xff]
  %v1939 = vld [vmem:[%s4 + $0x30] sm:$0xff]
  %v1940 = vld [vmem:[%s4 + $0x38] sm:$0xff]
  %v1941 = vpack.c.bf16 %v1934, %v1933
  %v1942 = vpack.c.bf16 %v1936, %v1935
  %v1943 = vpack.c.bf16 %v1938, %v1937
  %v1944 = vpack.c.bf16 %v1940, %v1939
  %v1945 = vunpack.c.l.bf16 %v1941
  %v1946 = vunpack.c.h.bf16 %v1941
  %v1947 = vunpack.c.l.bf16 %v1942
  %v1948 = vunpack.c.h.bf16 %v1942
  %v1949 = vunpack.c.l.bf16 %v1943
  %v1950 = vunpack.c.h.bf16 %v1943
  %v1951 = vunpack.c.l.bf16 %v1944
  %v1952 = vunpack.c.h.bf16 %v1944
  %v1953 = vsub.f32 %v1933, %v1945
  %v1954 = vsub.f32 %v1934, %v1946
  %v1955 = vsub.f32 %v1935, %v1947
  %v1956 = vsub.f32 %v1936, %v1948
  %v1957 = vsub.f32 %v1937, %v1949
  %v1958 = vsub.f32 %v1938, %v1950
  %v1959 = vsub.f32 %v1939, %v1951
  %v1960 = vsub.f32 %v1940, %v1952
  %v1961 = vpack.c.bf16 %v1954, %v1953
  %v1962 = vpack.c.bf16 %v1956, %v1955
  %v1963 = vpack.c.bf16 %v1958, %v1957
  %v1964 = vpack.c.bf16 %v1960, %v1959
  %v1966 = vsel %vm481, %v1909, 0
  %v1969 = vsel %vm481, %v1910, 0
  %v1972 = vsel %vm481, %v1911, 0
  %v1975 = vsel %vm481, %v1912, 0
  %1977 = vmatprep.subr.bf16.mxu0 0
  %1978 = vmatpush1.bf16.msra.mxu0 %v1961
  %1979 = vmatprep.subr.bf16.mxu0 0
  %1980 = vmatpush1.bf16.msra.mxu0 %v1962
  %1981 = vmatprep.subr.bf16.mxu0 0
  %1982 = vmatpush1.bf16.msra.mxu0 %v1963
  %1983 = vmatprep.subr.bf16.mxu0 0
  %1984 = vmatpush1.bf16.msra.mxu0 %v1964
  %1985 = vmatprep.subr.bf16.mxu0 0
  %1986 = vmatpush1.bf16.msra.mxu0 0
  %1987 = vmatprep.subr.bf16.mxu0 0
  %1988 = vmatpush1.bf16.msra.mxu0 0
  %1989 = vmatprep.subr.bf16.mxu0 0
  %1990 = vmatpush1.bf16.msra.mxu0 0
  %1991 = vmatprep.subr.bf16.mxu0 0
  %1992 = vmatpush1.bf16.msra.mxu0 0
  %1993 = vmatprep.subr.bf16.mxu0 0
  %1994 = vmatpush1.bf16.msra.mxu0 0
  %1995 = vmatprep.subr.bf16.mxu0 0
  %1996 = vmatpush1.bf16.msra.mxu0 0
  %1997 = vmatprep.subr.bf16.mxu0 0
  %1998 = vmatpush1.bf16.msra.mxu0 0
  %1999 = vmatprep.subr.bf16.mxu0 0
  %2000 = vmatpush1.bf16.msra.mxu0 0
  %2001 = vmatprep.subr.bf16.mxu0 0
  %2002 = vmatpush1.bf16.msra.mxu0 0
  %2003 = vmatprep.subr.bf16.mxu0 0
  %2004 = vmatpush1.bf16.msra.mxu0 0
  %2005 = vmatprep.subr.bf16.mxu0 0
  %2006 = vmatpush1.bf16.msra.mxu0 0
  %2007 = vmatprep.subr.bf16.mxu0 0
  %2008 = vmatpush1.bf16.msra.mxu0 0
  %2009 = vmatprep.mubr.bf16.mxu0 0
  %2010 = vmatmul.mubr.bf16.gmra.mrb[0].mxu0 %v1966
  %v2011 = vpop.f32.mrb[0].mxu0
  %v2012 = vadd.f32 0.0, %v2011
  %v2013 = vpop.f32.mrb[0].mxu0
  %v2014 = vpop.f32.mrb[0].mxu0
  %v2015 = vadd.f32 0.0, %v2014
  %v2016 = vpop.f32.mrb[0].mxu0
  %2017 = vmatprep.mubr.bf16.mxu0 0
  %2018 = vmatmul.mubr.bf16.gmra.mrb[0].mxu0 %v1969
  %v2019 = vpop.f32.mrb[0].mxu0
  %v2020 = vadd.f32 0.0, %v2019
  %v2021 = vpop.f32.mrb[0].mxu0
  %v2022 = vpop.f32.mrb[0].mxu0
  %v2023 = vadd.f32 0.0, %v2022
  %v2024 = vpop.f32.mrb[0].mxu0
  %2025 = vmatprep.mubr.bf16.mxu0 0
  %2026 = vmatmul.mubr.bf16.gmra.mrb[0].mxu0 %v1972
  %v2027 = vpop.f32.mrb[0].mxu0
  %v2028 = vadd.f32 0.0, %v2027
  %v2029 = vpop.f32.mrb[0].mxu0
  %v2030 = vpop.f32.mrb[0].mxu0
  %v2031 = vadd.f32 0.0, %v2030
  %v2032 = vpop.f32.mrb[0].mxu0
  %2033 = vmatprep.mubr.bf16.mxu0 0
  %2034 = vmatmul.mubr.bf16.gmra.mrb[0].mxu0 %v1975
  %v2035 = vpop.f32.mrb[0].mxu0
  %v2036 = vadd.f32 0.0, %v2035
  %v2037 = vpop.f32.mrb[0].mxu0
  %v2038 = vpop.f32.mrb[0].mxu0
  %v2039 = vadd.f32 0.0, %v2038
  %v2040 = vpop.f32.mrb[0].mxu0
  %2041 = vdwg.mxu0
  %2042 = vmatprep.subr.bf16.mxu0 0
  %2043 = vmatpush1.bf16.msra.mxu0 %v1941
  %2044 = vmatprep.subr.bf16.mxu0 0
  %2045 = vmatpush1.bf16.msra.mxu0 %v1942
  %2046 = vmatprep.subr.bf16.mxu0 0
  %2047 = vmatpush1.bf16.msra.mxu0 %v1943
  %2048 = vmatprep.subr.bf16.mxu0 0
  %2049 = vmatpush1.bf16.msra.mxu0 %v1944
  %2050 = vmatprep.subr.bf16.mxu0 0
  %2051 = vmatpush1.bf16.msra.mxu0 0
  %2052 = vmatprep.subr.bf16.mxu0 0
  %2053 = vmatpush1.bf16.msra.mxu0 0
  %2054 = vmatprep.subr.bf16.mxu0 0
  %2055 = vmatpush1.bf16.msra.mxu0 0
  %2056 = vmatprep.subr.bf16.mxu0 0
  %2057 = vmatpush1.bf16.msra.mxu0 0
  %2058 = vmatprep.subr.bf16.mxu0 0
  %2059 = vmatpush1.bf16.msra.mxu0 0
  %2060 = vmatprep.subr.bf16.mxu0 0
  %2061 = vmatpush1.bf16.msra.mxu0 0
  %2062 = vmatprep.subr.bf16.mxu0 0
  %2063 = vmatpush1.bf16.msra.mxu0 0
  %2064 = vmatprep.subr.bf16.mxu0 0
  %2065 = vmatpush1.bf16.msra.mxu0 0
  %2066 = vmatprep.subr.bf16.mxu0 0
  %2067 = vmatpush1.bf16.msra.mxu0 0
  %2068 = vmatprep.subr.bf16.mxu0 0
  %2069 = vmatpush1.bf16.msra.mxu0 0
  %2070 = vmatprep.subr.bf16.mxu0 0
  %2071 = vmatpush1.bf16.msra.mxu0 0
  %2072 = vmatprep.subr.bf16.mxu0 0
  %2073 = vmatpush1.bf16.msra.mxu0 0
  %2074 = vmatprep.mubr.bf16.mxu0 0
  %2075 = vmatmul.mubr.bf16.gmra.mrb[0].mxu0 %v1966
  %v2076 = vpop.f32.mrb[0].mxu0
  %v2077 = vadd.f32 %v2012, %v2076
  %v2078 = vpop.f32.mrb[0].mxu0
  %v2079 = vpop.f32.mrb[0].mxu0
  %v2080 = vadd.f32 %v2015, %v2079
  %v2081 = vpop.f32.mrb[0].mxu0
  %2082 = vmatprep.mubr.bf16.mxu0 0
  %2083 = vmatmul.mubr.bf16.gmra.mrb[0].mxu0 %v1969
  %v2084 = vpop.f32.mrb[0].mxu0
  %v2085 = vadd.f32 %v2020, %v2084
  %v2086 = vpop.f32.mrb[0].mxu0
  %v2087 = vpop.f32.mrb[0].mxu0
  %v2088 = vadd.f32 %v2023, %v2087
  %v2089 = vpop.f32.mrb[0].mxu0
  %2090 = vmatprep.mubr.bf16.mxu0 0
  %2091 = vmatmul.mubr.bf16.gmra.mrb[0].mxu0 %v1972
  %v2092 = vpop.f32.mrb[0].mxu0
  %v2093 = vadd.f32 %v2028, %v2092
  %v2094 = vpop.f32.mrb[0].mxu0
  %v2095 = vpop.f32.mrb[0].mxu0
  %v2096 = vadd.f32 %v2031, %v2095
  %v2097 = vpop.f32.mrb[0].mxu0
  %2098 = vmatprep.mubr.bf16.mxu0 0
  %2099 = vmatmul.mubr.bf16.gmra.mrb[0].mxu0 %v1975
  %v2100 = vpop.f32.mrb[0].mxu0
  %v2101 = vadd.f32 %v2036, %v2100
  %v2102 = vpop.f32.mrb[0].mxu0
  %v2103 = vpop.f32.mrb[0].mxu0
  %v2104 = vadd.f32 %v2039, %v2103
  %v2105 = vpop.f32.mrb[0].mxu0
  %2106 = vdwg.mxu0
  %v2108 = vsel %vm481, %v1929, 0
  %v2111 = vsel %vm481, %v1930, 0
  %v2114 = vsel %vm481, %v1931, 0
  %v2117 = vsel %vm481, %v1932, 0
  %2119 = vmatprep.subr.bf16.mxu0 0
  %2120 = vmatpush1.bf16.msra.mxu0 %v1941
  %2121 = vmatprep.subr.bf16.mxu0 0
  %2122 = vmatpush1.bf16.msra.mxu0 %v1942
  %2123 = vmatprep.subr.bf16.mxu0 0
  %2124 = vmatpush1.bf16.msra.mxu0 %v1943
  %2125 = vmatprep.subr.bf16.mxu0 0
  %2126 = vmatpush1.bf16.msra.mxu0 %v1944
  %2127 = vmatprep.subr.bf16.mxu0 0
  %2128 = vmatpush1.bf16.msra.mxu0 0
  %2129 = vmatprep.subr.bf16.mxu0 0
  %2130 = vmatpush1.bf16.msra.mxu0 0
  %2131 = vmatprep.subr.bf16.mxu0 0
  %2132 = vmatpush1.bf16.msra.mxu0 0
  %2133 = vmatprep.subr.bf16.mxu0 0
  %2134 = vmatpush1.bf16.msra.mxu0 0
  %2135 = vmatprep.subr.bf16.mxu0 0
  %2136 = vmatpush1.bf16.msra.mxu0 0
  %2137 = vmatprep.subr.bf16.mxu0 0
  %2138 = vmatpush1.bf16.msra.mxu0 0
  %2139 = vmatprep.subr.bf16.mxu0 0
  %2140 = vmatpush1.bf16.msra.mxu0 0
  %2141 = vmatprep.subr.bf16.mxu0 0
  %2142 = vmatpush1.bf16.msra.mxu0 0
  %2143 = vmatprep.subr.bf16.mxu0 0
  %2144 = vmatpush1.bf16.msra.mxu0 0
  %2145 = vmatprep.subr.bf16.mxu0 0
  %2146 = vmatpush1.bf16.msra.mxu0 0
  %2147 = vmatprep.subr.bf16.mxu0 0
  %2148 = vmatpush1.bf16.msra.mxu0 0
  %2149 = vmatprep.subr.bf16.mxu0 0
  %2150 = vmatpush1.bf16.msra.mxu0 0
  %2151 = vmatprep.mubr.bf16.mxu0 0
  %2152 = vmatmul.mubr.bf16.gmra.mrb[0].mxu0 %v2108
  %v2153 = vpop.f32.mrb[0].mxu0
  %v2154 = vadd.f32 0.0, %v2153
  %v2155 = vpop.f32.mrb[0].mxu0
  %v2156 = vpop.f32.mrb[0].mxu0
  %v2157 = vadd.f32 0.0, %v2156
  %v2158 = vpop.f32.mrb[0].mxu0
  %2159 = vmatprep.mubr.bf16.mxu0 0
  %2160 = vmatmul.mubr.bf16.gmra.mrb[0].mxu0 %v2111
  %v2161 = vpop.f32.mrb[0].mxu0
  %v2162 = vadd.f32 0.0, %v2161
  %v2163 = vpop.f32.mrb[0].mxu0
  %v2164 = vpop.f32.mrb[0].mxu0
  %v2165 = vadd.f32 0.0, %v2164
  %v2166 = vpop.f32.mrb[0].mxu0
  %2167 = vmatprep.mubr.bf16.mxu0 0
  %2168 = vmatmul.mubr.bf16.gmra.mrb[0].mxu0 %v2114
  %v2169 = vpop.f32.mrb[0].mxu0
  %v2170 = vadd.f32 0.0, %v2169
  %v2171 = vpop.f32.mrb[0].mxu0
  %v2172 = vpop.f32.mrb[0].mxu0
  %v2173 = vadd.f32 0.0, %v2172
  %v2174 = vpop.f32.mrb[0].mxu0
  %2175 = vmatprep.mubr.bf16.mxu0 0
  %2176 = vmatmul.mubr.bf16.gmra.mrb[0].mxu0 %v2117
  %v2177 = vpop.f32.mrb[0].mxu0
  %v2178 = vadd.f32 0.0, %v2177
  %v2179 = vpop.f32.mrb[0].mxu0
  %v2180 = vpop.f32.mrb[0].mxu0
  %v2181 = vadd.f32 0.0, %v2180
  %v2182 = vpop.f32.mrb[0].mxu0
  %2183 = vdwg.mxu0
  %v2184 = vadd.f32 %v2077, %v2154
  %v2185 = vadd.f32 %v2080, %v2157
  %v2186 = vadd.f32 %v2085, %v2162
  %v2187 = vadd.f32 %v2088, %v2165
  %v2188 = vadd.f32 %v2093, %v2170
  %v2189 = vadd.f32 %v2096, %v2173
  %v2190 = vadd.f32 %v2101, %v2178
  %v2191 = vadd.f32 %v2104, %v2181
  %v2192 = vld [vmem:[%s5] sm:$0x1]
  %v2194 = vlaneseq
  %v2195 = vshrl.u32 %v2194, 7
  %v2196 = vsub.s32 0, %v2195
  %v2197 = vrot.slane %v2192, %v2196
  %v2199 = vadd.f32 %v2184, %v2197
  %v2200 = vadd.f32 %v2185, %v2197
  %v2201 = vadd.f32 %v2186, %v2197
  %v2202 = vadd.f32 %v2187, %v2197
  %v2203 = vadd.f32 %v2188, %v2197
  %v2204 = vadd.f32 %v2189, %v2197
  %v2205 = vadd.f32 %v2190, %v2197
  %v2206 = vadd.f32 %v2191, %v2197
  %2207 = vmax.xlane.f32.xlu0 %v2199
  %v2208 = vpop.xlane.xlu0 %2207
  %2209 = vmax.xlane.f32.xlu0 %v2200
  %v2210 = vpop.xlane.xlu0 %2209
  %2211 = vmax.xlane.f32.xlu0 %v2201
  %v2212 = vpop.xlane.xlu0 %2211
  %2213 = vmax.xlane.f32.xlu0 %v2202
  %v2214 = vpop.xlane.xlu0 %2213
  %2215 = vmax.xlane.f32.xlu0 %v2203
  %v2216 = vpop.xlane.xlu0 %2215
  %2217 = vmax.xlane.f32.xlu0 %v2204
  %v2218 = vpop.xlane.xlu0 %2217
  %2219 = vmax.xlane.f32.xlu0 %v2205
  %v2220 = vpop.xlane.xlu0 %2219
  %2221 = vmax.xlane.f32.xlu0 %v2206
  %v2222 = vpop.xlane.xlu0 %2221
  %v2223 = vsub.f32 %v2199, %v2208
  %v2224 = vsub.f32 %v2200, %v2210
  %v2225 = vsub.f32 %v2201, %v2212
  %v2226 = vsub.f32 %v2202, %v2214
  %v2227 = vsub.f32 %v2203, %v2216
  %v2228 = vsub.f32 %v2204, %v2218
  %v2229 = vsub.f32 %v2205, %v2220
  %v2230 = vsub.f32 %v2206, %v2222
  %v2231 = vmul.f32 %v2223, 1.442695
  %v2232 = vpow.pop %v2231
  %v2233 = vmul.f32 %v2224, 1.442695
  %v2234 = vpow.pop %v2233
  %v2235 = vmul.f32 %v2225, 1.442695
  %v2236 = vpow.pop %v2235
  %v2237 = vmul.f32 %v2226, 1.442695
  %v2238 = vpow.pop %v2237
  %v2239 = vmul.f32 %v2227, 1.442695
  %v2240 = vpow.pop %v2239
  %v2241 = vmul.f32 %v2228, 1.442695
  %v2242 = vpow.pop %v2241
  %v2243 = vmul.f32 %v2229, 1.442695
  %v2244 = vpow.pop %v2243
  %v2245 = vmul.f32 %v2230, 1.442695
  %v2246 = vpow.pop %v2245
  %2247 = vadd.xlane.f32.xlu0 %v2232
  %v2248 = vpop.xlane.xlu0 %2247
  %2249 = vadd.xlane.f32.xlu0 %v2234
  %v2250 = vpop.xlane.xlu0 %2249
  %2251 = vadd.xlane.f32.xlu0 %v2236
  %v2252 = vpop.xlane.xlu0 %2251
  %2253 = vadd.xlane.f32.xlu0 %v2238
  %v2254 = vpop.xlane.xlu0 %2253
  %2255 = vadd.xlane.f32.xlu0 %v2240
  %v2256 = vpop.xlane.xlu0 %2255
  %2257 = vadd.xlane.f32.xlu0 %v2242
  %v2258 = vpop.xlane.xlu0 %2257
  %2259 = vadd.xlane.f32.xlu0 %v2244
  %v2260 = vpop.xlane.xlu0 %2259
  %2261 = vadd.xlane.f32.xlu0 %v2246
  %v2262 = vpop.xlane.xlu0 %2261
  %v2263 = vlog2.pop %v2248
  %v2264 = vmul.f32 %v2263, 0.6931472
  %v2265 = vlog2.pop %v2250
  %v2266 = vmul.f32 %v2265, 0.6931472
  %v2267 = vlog2.pop %v2252
  %v2268 = vmul.f32 %v2267, 0.6931472
  %v2269 = vlog2.pop %v2254
  %v2270 = vmul.f32 %v2269, 0.6931472
  %v2271 = vlog2.pop %v2256
  %v2272 = vmul.f32 %v2271, 0.6931472
  %v2273 = vlog2.pop %v2258
  %v2274 = vmul.f32 %v2273, 0.6931472
  %v2275 = vlog2.pop %v2260
  %v2276 = vmul.f32 %v2275, 0.6931472
  %v2277 = vlog2.pop %v2262
  %v2278 = vmul.f32 %v2277, 0.6931472
  %v2279 = vsub.f32 %v2223, %v2264
  %v2280 = vsub.f32 %v2224, %v2266
  %v2281 = vsub.f32 %v2225, %v2268
  %v2282 = vsub.f32 %v2226, %v2270
  %v2283 = vsub.f32 %v2227, %v2272
  %v2284 = vsub.f32 %v2228, %v2274
  %v2285 = vsub.f32 %v2229, %v2276
  %v2286 = vsub.f32 %v2230, %v2278
  %2287 = vst [vmem:[%s6] sm:$0xff] %v2279
  %2288 = vst [vmem:[%s6 + $0x8] sm:$0xff] %v2280
  %2289 = vst [vmem:[%s6 + $0x10] sm:$0xff] %v2281
  %2290 = vst [vmem:[%s6 + $0x18] sm:$0xff] %v2282
  %2291 = vst [vmem:[%s6 + $0x20] sm:$0xff] %v2283
  %2292 = vst [vmem:[%s6 + $0x28] sm:$0xff] %v2284
  %2293 = vst [vmem:[%s6 + $0x30] sm:$0xff] %v2285
  %2294 = vst [vmem:[%s6 + $0x38] sm:$0xff] %v2286
  // Predicated region
  $region26: #{slu_decoder_rnn.1} parent=0 // pred_check
    _
  $region27: #{slu_decoder_rnn.1} parent=0 // pred_check_branch
    %2296 = sbr.rel (0) target = $region29
  $region28: #{slu_decoder_rnn.1} parent=0 // pred_region
    _
  $region29: #{slu_decoder_rnn.1} parent=0 // pred_fallthru
    _
  // Predicated region
  $region30: #{slu_decoder_rnn.1} parent=0 // pred_check
    _
  $region31: #{slu_decoder_rnn.1} parent=0 // pred_check_branch
    %2298 = sbr.rel (0) target = $region33
  $region32: #{slu_decoder_rnn.1} parent=0 // pred_region
    _
  $region33: #{slu_decoder_rnn.1} parent=0 // pred_fallthru
    _

</llo_original>
